<compile_context>
chip_gen: v7x
topology: tpu7x:2x2x1
jax: 0.10.0
libtpu: 0.0.40
codegen_flags: <defaults>
</compile_context>

<pallas_src>
import functools

import jax
import jax.numpy as jnp
from jax import lax
from jax.experimental import pallas as pl
from jax.experimental.pallas import tpu as pltpu


def _attend_one_stream(q, k, v, C):
    """q, k, v: (CP, HW) f32 with rows >= C exactly zero.  Returns (C, HW)."""
    # Scores S[s, t] = sum_c q[c, s] * k[c, t].  Contracting the sublane dim of
    # the two tiny (CP, HW) operands only ever transposes the small q, never
    # the (HW, HW) result (which comes out in natural layout).
    s = lax.dot_general(q, k, (((0,), (0,)), ((), ())),
                        preferred_element_type=jnp.float32)           # (HW, HW)

    # Deferred softmax: un-normalized weights + row sums (normalize later on
    # the small output instead of the (HW, HW) matrix).
    m = jnp.max(s, axis=-1, keepdims=True)                            # (HW, 1)
    e = jnp.exp(s - m)                                                # (HW, HW)
    l = jnp.sum(e, axis=-1, keepdims=True)                            # (HW, 1)

    # Natural-layout matmul: contract e's lane dim (e is the MXU LHS); only the
    # tiny v operand is in transposed-RHS position -> no relayout of (HW, HW).
    out_t = lax.dot_general(e, v, (((1,), (1,)), ((), ())),
                            preferred_element_type=jnp.float32)       # (HW, CP)

    # Deferred normalization on the small output (exact reciprocal; switch to
    # pl.reciprocal(l, approx=True) only if ~1e-3 relative error is acceptable).
    out_t = out_t * (1.0 / l)                                         # (HW, CP)

    # Tiny (HW, CP)=(256, 8) -> (CP, HW) transpose, then drop the zero pad rows.
    return out_t.T[:C]                                                # (C, HW)


def _cta_kernel(w_ref, x_ref, o_ref, *, bb, C, CP, HW):
    # w_ref: (3*CP, C+1)   [Wq|bq ; Wk|bk ; Wv|bv], each block padded to CP rows.
    # x_ref: (bb, C+1, 2*HW) per batch: [x1 | x2] on lanes + a ones row (bias).
    # o_ref: (bb, 2*C, HW)   per batch: [out1 ; out2] stacked on sublanes.
    w = w_ref[...]
    for bi in range(bb):                 # bb is static (1 or B) -> unrolled
        x = x_ref[bi]                                                  # (C+1, 2HW)
        # One fused MXU push: q/k/v for both temporal streams, biases folded in.
        p = jnp.dot(w, x, preferred_element_type=jnp.float32)         # (3CP, 2HW)
        q, k, v = p[:CP], p[CP:2 * CP], p[2 * CP:]                    # aligned 8-row slices
        q1, q2 = q[:, :HW], q[:, HW:]
        k1, k2 = k[:, :HW], k[:, HW:]
        v1, v2 = v[:, :HW], v[:, HW:]

        out1 = _attend_one_stream(q1, k2, v1, C)                      # (C, HW)
        out2 = _attend_one_stream(q2, k1, v2, C)                      # (C, HW)

        # (2C, HW) = (8, 256): full-sublane, lane-dense -> unmasked store.
        o_ref[bi] = jnp.concatenate([out1, out2], axis=0).astype(o_ref.dtype)


def _single_tensorcore_chip() -> bool:
    """True for generations exposing one TensorCore per Pallas device (v5e/v6e):
    there a batch grid is a pure serial loop, so we collapse it.  Dual-TC chips
    (v7x) keep grid=(B,) so the 'parallel' axis shards across cores."""
    try:
        kind = jax.devices()[0].device_kind.lower()
    except Exception:
        return False
    return any(t in kind for t in
               ("v5e", "v5 lite", "v5lite", "v6e", "v6 lite", "v6lite"))


def cross_temporal_attention(x1, x2, wq, bq, wk, bk, wv, bv):
    """x1, x2: (B, C, H, W) float32.  w*: (C, C) PyTorch (out, in).  b*: (C,)."""
    B, C, H, W = x1.shape
    HW = H * W
    CP = ((C + 7) // 8) * 8         # pad each projection's output rows to a sublane tile
    dtype = x1.dtype

    # Activations: x1 ‖ x2 along lanes + a ones row (folds the Linear biases
    # into the projection matmul) -> one lane-dense (C+1, 2*HW) operand / batch.
    x12 = jnp.concatenate([x1.reshape(B, C, HW), x2.reshape(B, C, HW)], axis=-1)
    x_aug = jnp.concatenate([x12, jnp.ones((B, 1, 2 * HW), dtype)], axis=1)

    # Parameters: a single (3*CP, C+1) operand; pad rows are zeros (exact no-op).
    def _pack(w, b):
        blk = jnp.zeros((CP, C + 1), dtype)
        return blk.at[:C, :C].set(w.astype(dtype)).at[:C, C].set(b.astype(dtype))

    w_aug = jnp.concatenate([_pack(wq, bq), _pack(wk, bk), _pack(wv, bv)], axis=0)

    # Grid shaping per generation (see _single_tensorcore_chip).
    bb = B if _single_tensorcore_chip() else 1
    grid = (pl.cdiv(B, bb),)
    semantics = ("arbitrary",) if bb == B else ("parallel",)

    kernel = functools.partial(_cta_kernel, bb=bb, C=C, CP=CP, HW=HW)

    # TODO(synk): if H*W grows (>~1024) the quadratic (HW, HW) intermediates
    # become a v7x VMEM hazard (64 MiB physical) -- switch to a query-tiled
    # online-softmax (flash) loop instead of materializing the full matrix.
    out = pl.pallas_call(
        kernel,
        out_shape=jax.ShapeDtypeStruct((B, 2 * C, HW), dtype),
        grid_spec=pltpu.PrefetchScalarGridSpec(
            num_scalar_prefetch=0,
            grid=grid,
            in_specs=[
                pl.BlockSpec((3 * CP, C + 1), lambda i: (0, 0)),
                pl.BlockSpec((bb, C + 1, 2 * HW), lambda i: (i, 0, 0)),
            ],
            out_specs=pl.BlockSpec((bb, 2 * C, HW), lambda i: (i, 0, 0)),
        ),
        compiler_params=pltpu.CompilerParams(
            dimension_semantics=semantics,
            vmem_limit_bytes=32 * 1024 * 1024,
        ),
    )(w_aug, x_aug)

    out1 = out[:, :C, :].reshape(B, C, H, W)
    out2 = out[:, C:, :].reshape(B, C, H, W)
    return out1, out2


def _reference(x1, x2, wq, bq, wk, bk, wv, bv):
    """Pure-JAX reference mirroring the PyTorch forward."""
    B, C, H, W = x1.shape
    x1f = x1.reshape(B, C, -1).transpose(0, 2, 1)   # (B, HW, C)
    x2f = x2.reshape(B, C, -1).transpose(0, 2, 1)

    def lin(x, w, b):                               # PyTorch Linear: x @ W^T + b
        return jnp.einsum('bsc,oc->bso', x, w) + b

    q1, k1, v1 = lin(x1f, wq, bq), lin(x1f, wk, bk), lin(x1f, wv, bv)
    q2, k2, v2 = lin(x2f, wq, bq), lin(x2f, wk, bk), lin(x2f, wv, bv)

    a1 = jax.nn.softmax(jnp.einsum('bsc,btc->bst', q1, k2), axis=-1)
    a2 = jax.nn.softmax(jnp.einsum('bsc,btc->bst', q2, k1), axis=-1)

    o1 = jnp.einsum('bst,btc->bsc', a1, v1).transpose(0, 2, 1).reshape(B, C, H, W)
    o2 = jnp.einsum('bst,btc->bsc', a2, v2).transpose(0, 2, 1).reshape(B, C, H, W)
    return o1, o2


if __name__ == "__main__":
    key = jax.random.PRNGKey(0)
    k1, k2, kq, kbq, kk, kbk, kv, kbv = jax.random.split(key, 8)

    B, C, H, W = 2, 4, 16, 16          # feature_dim = C = 4, HW = 256
    x1 = jax.random.normal(k1, (B, C, H, W), dtype=jnp.float32)
    x2 = jax.random.normal(k2, (B, C, H, W), dtype=jnp.float32)

    # Deterministic synthetic Linear(C, C) params (kaiming-uniform-like range).
    bound = 1.0 / (C ** 0.5)
    wq = jax.random.uniform(kq, (C, C), jnp.float32, -bound, bound)
    bq = jax.random.uniform(kbq, (C,), jnp.float32, -bound, bound)
    wk = jax.random.uniform(kk, (C, C), jnp.float32, -bound, bound)
    bk = jax.random.uniform(kbk, (C,), jnp.float32, -bound, bound)
    wv = jax.random.uniform(kv, (C, C), jnp.float32, -bound, bound)
    bv = jax.random.uniform(kbv, (C,), jnp.float32, -bound, bound)

    out1, out2 = cross_temporal_attention(x1, x2, wq, bq, wk, bk, wv, bv)
    jax.block_until_ready((out1, out2))

    ref1, ref2 = _reference(x1, x2, wq, bq, wk, bk, wv, bv)
    assert jnp.allclose(out1, ref1, rtol=2e-4, atol=2e-5), "out1 mismatch"
    assert jnp.allclose(out2, ref2, rtol=2e-4, atol=2e-5), "out2 mismatch"
    print("KERNEL_OK")
</pallas_src>

<mosaic_0001>
module attributes {stable_mosaic.version = 11 : i64} {
  func.func @_cta_kernel(%arg0: i32, %arg1: memref<24x5xf32, #tpu.memory_space<vmem>>, %arg2: memref<1x5x512xf32, #tpu.memory_space<vmem>>, %arg3: memref<1x8x256xf32, #tpu.memory_space<vmem>>) attributes {dimension_semantics = [#tpu.dimension_semantics<parallel>], iteration_bounds = array<i64: 2>, scalar_prefetch = 0 : i64, scratch_operands = 0 : i64, tpu.core_type = #tpu.core_type<tc>, window_params = [{pipeline_mode = #tpu.pipeline_mode<synchronous>, transform_indices = @transform_0, window_bounds = array<i64: 24, 5>}, {transform_indices = @transform_1, window_bounds = array<i64: 1, 5, 512>}, {transform_indices = @transform_2, window_bounds = array<i64: 1, 8, 256>}]} {
    %c0 = arith.constant 0 : index
    %c0_0 = arith.constant 0 : index
    %0 = vector.load %arg1[%c0, %c0_0] : memref<24x5xf32, #tpu.memory_space<vmem>>, vector<24x5xf32>
    %c0_1 = arith.constant 0 : index
    %c0_2 = arith.constant 0 : index
    %c0_3 = arith.constant 0 : index
    %1 = vector.load %arg2[%c0_1, %c0_2, %c0_3] : memref<1x5x512xf32, #tpu.memory_space<vmem>>, vector<1x5x512xf32>
    %2 = vector.shape_cast %1 : vector<1x5x512xf32> to vector<5x512xf32>
    %cst = arith.constant dense<0.000000e+00> : vector<24x512xf32>
    %3 = tpu.matmul %0, %2, %cst {dimension_numbers = #tpu.dot_dimension_numbers<[1], [0], [0], [1], [0, 0, 1, 1], [], []>} : vector<24x5xf32>, vector<5x512xf32>, vector<24x512xf32> -> vector<24x512xf32>
    %4 = vector.extract_strided_slice %3 {offsets = [0, 0], sizes = [8, 512], strides = [1, 1]} : vector<24x512xf32> to vector<8x512xf32>
    %5 = vector.extract_strided_slice %3 {offsets = [8, 0], sizes = [8, 512], strides = [1, 1]} : vector<24x512xf32> to vector<8x512xf32>
    %6 = vector.extract_strided_slice %3 {offsets = [16, 0], sizes = [8, 512], strides = [1, 1]} : vector<24x512xf32> to vector<8x512xf32>
    %7 = vector.extract_strided_slice %4 {offsets = [0, 0], sizes = [8, 256], strides = [1, 1]} : vector<8x512xf32> to vector<8x256xf32>
    %8 = vector.extract_strided_slice %4 {offsets = [0, 256], sizes = [8, 256], strides = [1, 1]} : vector<8x512xf32> to vector<8x256xf32>
    %9 = vector.extract_strided_slice %5 {offsets = [0, 0], sizes = [8, 256], strides = [1, 1]} : vector<8x512xf32> to vector<8x256xf32>
    %10 = vector.extract_strided_slice %5 {offsets = [0, 256], sizes = [8, 256], strides = [1, 1]} : vector<8x512xf32> to vector<8x256xf32>
    %11 = vector.extract_strided_slice %6 {offsets = [0, 0], sizes = [8, 256], strides = [1, 1]} : vector<8x512xf32> to vector<8x256xf32>
    %12 = vector.extract_strided_slice %6 {offsets = [0, 256], sizes = [8, 256], strides = [1, 1]} : vector<8x512xf32> to vector<8x256xf32>
    %cst_4 = arith.constant dense<0.000000e+00> : vector<256x256xf32>
    %13 = tpu.matmul %7, %10, %cst_4 {dimension_numbers = #tpu.dot_dimension_numbers<[0], [0], [1], [1], [0, 1, 1, 1], [], []>} : vector<8x256xf32>, vector<8x256xf32>, vector<256x256xf32> -> vector<256x256xf32>
    %cst_5 = arith.constant dense<0xFF800000> : vector<256xf32>
    %14 = vector.multi_reduction <maximumf>, %13, %cst_5 [1] : vector<256x256xf32> to vector<256xf32>
    %15 = vector.shape_cast %14 : vector<256xf32> to vector<256x1xf32>
    %16 = vector.broadcast %15 : vector<256x1xf32> to vector<256x256xf32>
    %17 = arith.subf %13, %16 : vector<256x256xf32>
    %18 = math.exp %17 : vector<256x256xf32>
    %cst_6 = arith.constant dense<0.000000e+00> : vector<256xf32>
    %19 = vector.multi_reduction <add>, %18, %cst_6 [1] : vector<256x256xf32> to vector<256xf32>
    %20 = vector.shape_cast %19 : vector<256xf32> to vector<256x1xf32>
    %cst_7 = arith.constant dense<0.000000e+00> : vector<256x8xf32>
    %21 = tpu.matmul %18, %11, %cst_7 {dimension_numbers = #tpu.dot_dimension_numbers<[1], [1], [0], [0], [0, 0, 1, 0], [], []>} : vector<256x256xf32>, vector<8x256xf32>, vector<256x8xf32> -> vector<256x8xf32>
    %cst_8 = arith.constant 1.000000e+00 : f32
    %22 = vector.broadcast %cst_8 : f32 to vector<256x1xf32>
    %23 = arith.divf %22, %20 : vector<256x1xf32>
    %24 = vector.broadcast %23 : vector<256x1xf32> to vector<256x8xf32>
    %25 = arith.mulf %21, %24 : vector<256x8xf32>
    %26 = tpu.transpose %25, [1, 0] : vector<256x8xf32> -> vector<8x256xf32>
    %27 = vector.extract_strided_slice %26 {offsets = [0, 0], sizes = [4, 256], strides = [1, 1]} : vector<8x256xf32> to vector<4x256xf32>
    %cst_9 = arith.constant dense<0.000000e+00> : vector<256x256xf32>
    %28 = tpu.matmul %8, %9, %cst_9 {dimension_numbers = #tpu.dot_dimension_numbers<[0], [0], [1], [1], [0, 1, 1, 1], [], []>} : vector<8x256xf32>, vector<8x256xf32>, vector<256x256xf32> -> vector<256x256xf32>
    %cst_10 = arith.constant dense<0xFF800000> : vector<256xf32>
    %29 = vector.multi_reduction <maximumf>, %28, %cst_10 [1] : vector<256x256xf32> to vector<256xf32>
    %30 = vector.shape_cast %29 : vector<256xf32> to vector<256x1xf32>
    %31 = vector.broadcast %30 : vector<256x1xf32> to vector<256x256xf32>
    %32 = arith.subf %28, %31 : vector<256x256xf32>
    %33 = math.exp %32 : vector<256x256xf32>
    %cst_11 = arith.constant dense<0.000000e+00> : vector<256xf32>
    %34 = vector.multi_reduction <add>, %33, %cst_11 [1] : vector<256x256xf32> to vector<256xf32>
    %35 = vector.shape_cast %34 : vector<256xf32> to vector<256x1xf32>
    %cst_12 = arith.constant dense<0.000000e+00> : vector<256x8xf32>
    %36 = tpu.matmul %33, %12, %cst_12 {dimension_numbers = #tpu.dot_dimension_numbers<[1], [1], [0], [0], [0, 0, 1, 0], [], []>} : vector<256x256xf32>, vector<8x256xf32>, vector<256x8xf32> -> vector<256x8xf32>
    %cst_13 = arith.constant 1.000000e+00 : f32
    %37 = vector.broadcast %cst_13 : f32 to vector<256x1xf32>
    %38 = arith.divf %37, %35 : vector<256x1xf32>
    %39 = vector.broadcast %38 : vector<256x1xf32> to vector<256x8xf32>
    %40 = arith.mulf %36, %39 : vector<256x8xf32>
    %41 = tpu.transpose %40, [1, 0] : vector<256x8xf32> -> vector<8x256xf32>
    %42 = vector.extract_strided_slice %41 {offsets = [0, 0], sizes = [4, 256], strides = [1, 1]} : vector<8x256xf32> to vector<4x256xf32>
    %43 = tpu.concatenate %27, %42 in 0 : vector<4x256xf32>, vector<4x256xf32> -> vector<8x256xf32>
    %c0_14 = arith.constant 0 : index
    %c0_15 = arith.constant 0 : index
    %c0_16 = arith.constant 0 : index
    %44 = vector.load %arg3[%c0_14, %c0_15, %c0_16] : memref<1x8x256xf32, #tpu.memory_space<vmem>>, vector<1x8x256xf32>
    %45 = vector.shape_cast %44 : vector<1x8x256xf32> to vector<8x256xf32>
    %46 = vector.shape_cast %43 : vector<8x256xf32> to vector<1x8x256xf32>
    tpu.vector_store %arg3[%c0_14, %c0_15, %c0_16], %46 {strides = array<i32>} : memref<1x8x256xf32, #tpu.memory_space<vmem>>, vector<1x8x256xf32>,
    return
  }
  func.func @transform_0(%arg0: i32) -> (i32, i32) {
    %c0_i32 = arith.constant 0 : i32
    %c0_i32_0 = arith.constant 0 : i32
    %c0_i32_1 = arith.constant 0 : i32
    return %c0_i32, %c0_i32_0 : i32, i32
  }
  func.func @transform_1(%arg0: i32) -> (i32, i32, i32) {
    %c0_i32 = arith.constant 0 : i32
    %c0_i32_0 = arith.constant 0 : i32
    %c0_i32_1 = arith.constant 0 : i32
    return %arg0, %c0_i32, %c0_i32_0 : i32, i32, i32
  }
  func.func @transform_2(%arg0: i32) -> (i32, i32, i32) {
    %c0_i32 = arith.constant 0 : i32
    %c0_i32_0 = arith.constant 0 : i32
    %c0_i32_1 = arith.constant 0 : i32
    return %arg0, %c0_i32, %c0_i32_0 : i32, i32, i32
  }
}

</mosaic_0001>

<llo_original>
// kernel: tpu_custom_call.1
$region0: #{tpu_custom_call.1}
  #allocation0 [shape = 'u32[]', space=smem, size = 0x4, offset = 0x4, fixed_abs, tag = 'smem constant byte address 0x4 - core index']
  #allocation1 [shape = 'u32[144,128]{1,0:T(1,128)}', space=vmem, size = 0x12000, scoped, tag = 'internal scratch']
  %s0 = inlined_call_operand.vmem [shape: f32[24,5], index: 0, kind: input, shape index: {}]
  %s1 = inlined_call_operand.vmem [shape: f32[2,5,512], index: 1, kind: input, shape index: {}]
  %s2 = inlined_call_operand.hbm [shape: f32[2,8,256], index: 2, kind: output, shape index: {}]
  %s3 = sld [smem:[#allocation0]]
  $region41: #{tpu_custom_call.1} parent=0
    _
  %s5 = ssub.s32 1, %s3
  %s6 = scalar_select 0, %s5, %s3
  $region1: #{tpu_custom_call.1} parent=0
    #allocation2 [shape = 'u8[16384]{0}', space=vmem, size = 0x4000, scoped, tag = 'output window, operand 0']
    #allocation3 [shape = 's32[2]{0}', space=sflag, size = 0x8, scoped, tag = 'scoped memory for tpu_custom_call.1']
    %7 = vsyncpa [#allocation3], 0
    %s8 = scalar_lea.sflag [#allocation3], 1
    %9 = vsyncpa %s8, 0
    loop: start=0, step=1, limit=4
    $region2: #{tpu_custom_call.1} parent=1 // loop_pre_header
      _
    $region3: #{tpu_custom_call.1} parent=1 // loop_header
      %s11 = sphi 0, %s15
      %p12 = scmp.ge.s32.totalorder %s11, 4
      %s19 = sphi 0, %s19
      %s21 = sphi 0, %s19
      %s22 = sphi 0, %s21
      %s36 = sphi 0, %s22
      %s42 = sphi 0, %s44
      %s45 = sphi 0, %s42
      %s46 = sphi 0, %s45
      %s62 = sphi 0, %s46
      %s68 = sphi 0, %s70
      %s71 = sphi 0, %s68
      %s72 = sphi 0, %s71
      %s88 = sphi 0, %s72
    $region4: #{tpu_custom_call.1} parent=1 // loop_header_branch
      %14 = sbr.rel (%p12) target = $region8
    $region5: #{tpu_custom_call.1} parent=1 // loop_body
      %s16 = ssub.s32 %s11, 1
      %s17 = ssub.s32 %s11, 2
      %s18 = sadd.s32 %s11, 1
      %s20 = sadd.s32 %s19, 1
      %p23 = scmp.eq.s32.totalorder %s11, 1
      %p24 = scmp.ne.s32.totalorder %s19, %s21
      %p25 = scmp.eq.s32.totalorder %s11, 0
      %p26 = por %p24, %p25
      %p27 = scmp.ne.s32.totalorder %s19, %s21
      %p28 = scmp.eq.s32.totalorder %s16, 1
      %p29 = por %p27, %p28
      %p30 = scmp.ne.s32.totalorder %s21, %s22
      %p31 = scmp.eq.s32.totalorder %s16, 0
      %p32 = por %p30, %p31
      %p33 = scmp.ne.s32.totalorder %s21, %s22
      %p34 = scmp.eq.s32.totalorder %s17, 1
      %p35 = por %p33, %p34
      %p37 = scmp.ne.s32.totalorder %s22, %s36
      %p38 = scmp.eq.s32.totalorder %s17, 0
      %p39 = por %p37, %p38
      %s40 = ssub.s32 %s11, %s18
      %p41 = scmp.eq.s32.totalorder %s40, 0
      %s43 = sadd.s32 %s42, 1
      %s44 = scalar_select %p41, %s42, %s43
      %p47 = pneg %p41
      %p48 = scmp.eq.s32.totalorder %s11, 1
      %p49 = por %p47, %p48
      %p50 = scmp.ne.s32.totalorder %s42, %s45
      %p51 = scmp.eq.s32.totalorder %s11, 0
      %p52 = por %p50, %p51
      %p53 = scmp.ne.s32.totalorder %s42, %s45
      %p54 = scmp.eq.s32.totalorder %s16, 1
      %p55 = por %p53, %p54
      %p56 = scmp.ne.s32.totalorder %s45, %s46
      %p57 = scmp.eq.s32.totalorder %s16, 0
      %p58 = por %p56, %p57
      %p59 = scmp.ne.s32.totalorder %s45, %s46
      %p60 = scmp.eq.s32.totalorder %s17, 1
      %p61 = por %p59, %p60
      %p63 = scmp.ne.s32.totalorder %s46, %s62
      %p64 = scmp.eq.s32.totalorder %s17, 0
      %p65 = por %p63, %p64
      %s66 = ssub.s32 %s11, %s18
      %p67 = scmp.eq.s32.totalorder %s66, 0
      %s69 = sadd.s32 %s68, 1
      %s70 = scalar_select %p67, %s68, %s69
      %p73 = pneg %p67
      %p74 = scmp.eq.s32.totalorder %s11, 1
      %p75 = por %p73, %p74
      %p76 = scmp.ne.s32.totalorder %s68, %s71
      %p77 = scmp.eq.s32.totalorder %s11, 0
      %p78 = por %p76, %p77
      %p79 = scmp.ne.s32.totalorder %s68, %s71
      %p80 = scmp.eq.s32.totalorder %s16, 1
      %p81 = por %p79, %p80
      %p82 = scmp.ne.s32.totalorder %s71, %s72
      %p83 = scmp.eq.s32.totalorder %s16, 0
      %p84 = por %p82, %p83
      %p85 = scmp.ne.s32.totalorder %s71, %s72
      %p86 = scmp.eq.s32.totalorder %s17, 1
      %p87 = por %p85, %p86
      %p89 = scmp.ne.s32.totalorder %s72, %s88
      %p90 = scmp.eq.s32.totalorder %s17, 0
      %p91 = por %p89, %p90
      %p92 = scmp.le.s32.totalorder 1, %s11
      %p93 = scmp.lt.s32.totalorder %s11, 3
      %p94 = pnand %p92, %p93
      %p95 = pneg %p94
      // Predicated region
      $region9: #{tpu_custom_call.1} parent=5 // pred_check
        _
      $region10: #{tpu_custom_call.1} parent=5 // pred_check_branch
        %97 = sbr.rel (%p94) target = $region12
      $region11: #{tpu_custom_call.1} parent=5 // pred_region
        %s98 = ssub.s32 %s11, 1
        // Predicated region
        $region13: #{tpu_custom_call.1} parent=11 // pred_check
          %p99 = pneg %p32
        $region14: #{tpu_custom_call.1} parent=11 // pred_check_branch
          %101 = sbr.rel (%p99) target = $region16
        $region15: #{tpu_custom_call.1} parent=11 // pred_region
          _
        $region16: #{tpu_custom_call.1} parent=11 // pred_fallthru
          _
      $region12: #{tpu_custom_call.1} parent=5 // pred_fallthru
        _
      %p102 = scmp.lt.s32.totalorder %s11, 2
      // Predicated region
      $region17: #{tpu_custom_call.1} parent=5 // pred_check
        %p103 = pneg %p102
      $region18: #{tpu_custom_call.1} parent=5 // pred_check_branch
        %105 = sbr.rel (%p103) target = $region20
      $region19: #{tpu_custom_call.1} parent=5 // pred_region
        // Predicated region
        $region21: #{tpu_custom_call.1} parent=19 // pred_check
          %p106 = pneg %p52
        $region22: #{tpu_custom_call.1} parent=19 // pred_check_branch
          %108 = sbr.rel (%p106) target = $region24
        $region23: #{tpu_custom_call.1} parent=19 // pred_region
          %p109 = scmp.lt.s32.totalorder %s11, 1
          %s110 = scalar_select %p109, %s11, 1
          %s111 = smul.addr %s110, 4
          %s112 = smul.addr %s111, 8
          %s113 = scalar_lea.vmem %s1, %s112
        $region24: #{tpu_custom_call.1} parent=19 // pred_fallthru
          _
      $region20: #{tpu_custom_call.1} parent=5 // pred_fallthru
        _
      %p114 = scmp.le.s32.totalorder 1, %s11
      %p115 = scmp.lt.s32.totalorder %s11, 3
      %p116 = pnand %p114, %p115
      %p117 = pneg %p116
      // Predicated region
      $region25: #{tpu_custom_call.1} parent=5 // pred_check
        _
      $region26: #{tpu_custom_call.1} parent=5 // pred_check_branch
        %119 = sbr.rel (%p116) target = $region28
      $region27: #{tpu_custom_call.1} parent=5 // pred_region
        %s120 = ssub.s32 %s11, 1
        %p121 = pneg %p32
        %p122 = pneg %p29
        %p123 = scmp.lt.s32.totalorder %s16, 1
        %s124 = scalar_select %p123, %s16, 1
        %s125 = smul.addr %s124, 4
        %s126 = smul.addr %s125, 8
        %s127 = scalar_lea.vmem %s1, %s126
        %p128 = pneg %p58
        %p129 = pneg %p55
        %p130 = pneg %p84
        %p131 = pneg %p81
        %s132 = sand.u32 %s71, 1
        %s133 = scalar_lea.sflag [#allocation3], %s132
        %s134 = sand.u32 %s71, 1
        %s135 = smul.addr %s134, 16
        %s136 = scalar_lea.vmem [#allocation2], %s135
        %p137 = scmp.lt.s32.totalorder %s16, 1
        %s138 = scalar_select %p137, %s16, 1
        %s139 = smul.addr %s138, 4
        %s140 = smul.addr %s139, 8
        %s141 = scalar_lea.vmem %s1, %s140
        %v142 = vld [vmem:[%s0] sm:$0xff]
        %v143 = vld [vmem:[%s0 + $0x8] sm:$0xff]
        %v144 = vld [vmem:[%s0 + $0x10] sm:$0xff]
        %v145 = vld [vmem:[%s141] sm:$0x1f]
        %v146 = vld [vmem:[%s141 + $0x8] sm:$0x1f]
        %v147 = vld [vmem:[%s141 + $0x10] sm:$0x1f]
        %v148 = vld [vmem:[%s141 + $0x18] sm:$0x1f]
        %vm149 = vcmask 39936
        %v151 = vsel %vm149, %v142, 0
        %v154 = vsel %vm149, %v143, 0
        %v157 = vsel %vm149, %v144, 0
        %vm159 = vcmask 1044480
        %v161 = vsel %vm159, %v145, 0
        %v164 = vsel %vm159, %v146, 0
        %v167 = vsel %vm159, %v147, 0
        %v170 = vsel %vm159, %v148, 0
        %172 = vmatprep.subr.mxu0 %v164
        %173 = vmatpush1.msra.mxu0 %v161
        %174 = vmatprep.subr.mxu0 0.0
        %175 = vmatpush1.msra.mxu0 0.0
        %176 = vmatprep.subr.mxu0 0.0
        %177 = vmatpush1.msra.mxu0 0.0
        %178 = vmatprep.subr.mxu0 0.0
        %179 = vmatpush1.msra.mxu0 0.0
        %180 = vmatprep.subr.mxu0 0.0
        %181 = vmatpush1.msra.mxu0 0.0
        %182 = vmatprep.subr.mxu0 0.0
        %183 = vmatpush1.msra.mxu0 0.0
        %184 = vmatprep.subr.mxu0 0.0
        %185 = vmatpush1.msra.mxu0 0.0
        %186 = vmatprep.subr.mxu0 0.0
        %187 = vmatpush1.msra.mxu0 0.0
        %188 = vmatprep.subr.mxu0 0.0
        %189 = vmatpush1.msra.mxu0 0.0
        %190 = vmatprep.subr.mxu0 0.0
        %191 = vmatpush1.msra.mxu0 0.0
        %192 = vmatprep.subr.mxu0 0.0
        %193 = vmatpush1.msra.mxu0 0.0
        %194 = vmatprep.subr.mxu0 0.0
        %195 = vmatpush1.msra.mxu0 0.0
        %196 = vmatprep.subr.mxu0 0.0
        %197 = vmatpush1.msra.mxu0 0.0
        %198 = vmatprep.subr.mxu0 0.0
        %199 = vmatpush1.msra.mxu0 0.0
        %200 = vmatprep.subr.mxu0 0.0
        %201 = vmatpush1.msra.mxu0 0.0
        %202 = vmatprep.subr.mxu0 0.0
        %203 = vmatpush1.msra.mxu0 0.0
        %204 = vmatprep.subr.mxu0 0.0
        %205 = vmatpush1.msra.mxu0 0.0
        %206 = vmatprep.subr.mxu0 0.0
        %207 = vmatpush1.msra.mxu0 0.0
        %208 = vmatprep.subr.mxu0 0.0
        %209 = vmatpush1.msra.mxu0 0.0
        %210 = vmatprep.subr.mxu0 0.0
        %211 = vmatpush1.msra.mxu0 0.0
        %212 = vmatprep.subr.mxu0 0.0
        %213 = vmatpush1.msra.mxu0 0.0
        %214 = vmatprep.subr.mxu0 0.0
        %215 = vmatpush1.msra.mxu0 0.0
        %216 = vmatprep.subr.mxu0 0.0
        %217 = vmatpush1.msra.mxu0 0.0
        %218 = vmatprep.subr.mxu0 0.0
        %219 = vmatpush1.msra.mxu0 0.0
        %220 = vmatprep.subr.mxu0 0.0
        %221 = vmatpush1.msra.mxu0 0.0
        %222 = vmatprep.subr.mxu0 0.0
        %223 = vmatpush1.msra.mxu0 0.0
        %224 = vmatprep.subr.mxu0 0.0
        %225 = vmatpush1.msra.mxu0 0.0
        %226 = vmatprep.subr.mxu0 0.0
        %227 = vmatpush1.msra.mxu0 0.0
        %228 = vmatprep.subr.mxu0 0.0
        %229 = vmatpush1.msra.mxu0 0.0
        %230 = vmatprep.subr.mxu0 0.0
        %231 = vmatpush1.msra.mxu0 0.0
        %232 = vmatprep.subr.mxu0 0.0
        %233 = vmatpush1.msra.mxu0 0.0
        %234 = vmatprep.subr.mxu0 0.0
        %235 = vmatpush1.msra.mxu0 0.0
        %236 = vmatprep.mubr.f32.mxu0 0.0
        %237 = vmatmul.mubr.f32.gmra.mrb[0].mxu0 %v151
        %v238 = vpop.f32.mrb[0].mxu0
        %v239 = vadd.f32 0.0, %v238
        %v240 = vpop.f32.mrb[0].mxu0
        %v241 = vadd.f32 0.0, %v240
        %242 = vmatprep.mubr.f32.mxu0 0.0
        %243 = vmatmul.mubr.f32.gmra.mrb[0].mxu0 %v154
        %v244 = vpop.f32.mrb[0].mxu0
        %v245 = vadd.f32 0.0, %v244
        %v246 = vpop.f32.mrb[0].mxu0
        %v247 = vadd.f32 0.0, %v246
        %248 = vmatprep.mubr.f32.mxu0 0.0
        %249 = vmatmul.mubr.f32.gmra.mrb[0].mxu0 %v157
        %v250 = vpop.f32.mrb[0].mxu0
        %v251 = vadd.f32 0.0, %v250
        %v252 = vpop.f32.mrb[0].mxu0
        %v253 = vadd.f32 0.0, %v252
        %254 = vdwg.mxu0
        %255 = vmatprep.subr.mxu0 %v170
        %256 = vmatpush1.msra.mxu0 %v167
        %257 = vmatprep.subr.mxu0 0.0
        %258 = vmatpush1.msra.mxu0 0.0
        %259 = vmatprep.subr.mxu0 0.0
        %260 = vmatpush1.msra.mxu0 0.0
        %261 = vmatprep.subr.mxu0 0.0
        %262 = vmatpush1.msra.mxu0 0.0
        %263 = vmatprep.subr.mxu0 0.0
        %264 = vmatpush1.msra.mxu0 0.0
        %265 = vmatprep.subr.mxu0 0.0
        %266 = vmatpush1.msra.mxu0 0.0
        %267 = vmatprep.subr.mxu0 0.0
        %268 = vmatpush1.msra.mxu0 0.0
        %269 = vmatprep.subr.mxu0 0.0
        %270 = vmatpush1.msra.mxu0 0.0
        %271 = vmatprep.subr.mxu0 0.0
        %272 = vmatpush1.msra.mxu0 0.0
        %273 = vmatprep.subr.mxu0 0.0
        %274 = vmatpush1.msra.mxu0 0.0
        %275 = vmatprep.subr.mxu0 0.0
        %276 = vmatpush1.msra.mxu0 0.0
        %277 = vmatprep.subr.mxu0 0.0
        %278 = vmatpush1.msra.mxu0 0.0
        %279 = vmatprep.subr.mxu0 0.0
        %280 = vmatpush1.msra.mxu0 0.0
        %281 = vmatprep.subr.mxu0 0.0
        %282 = vmatpush1.msra.mxu0 0.0
        %283 = vmatprep.subr.mxu0 0.0
        %284 = vmatpush1.msra.mxu0 0.0
        %285 = vmatprep.subr.mxu0 0.0
        %286 = vmatpush1.msra.mxu0 0.0
        %287 = vmatprep.subr.mxu0 0.0
        %288 = vmatpush1.msra.mxu0 0.0
        %289 = vmatprep.subr.mxu0 0.0
        %290 = vmatpush1.msra.mxu0 0.0
        %291 = vmatprep.subr.mxu0 0.0
        %292 = vmatpush1.msra.mxu0 0.0
        %293 = vmatprep.subr.mxu0 0.0
        %294 = vmatpush1.msra.mxu0 0.0
        %295 = vmatprep.subr.mxu0 0.0
        %296 = vmatpush1.msra.mxu0 0.0
        %297 = vmatprep.subr.mxu0 0.0
        %298 = vmatpush1.msra.mxu0 0.0
        %299 = vmatprep.subr.mxu0 0.0
        %300 = vmatpush1.msra.mxu0 0.0
        %301 = vmatprep.subr.mxu0 0.0
        %302 = vmatpush1.msra.mxu0 0.0
        %303 = vmatprep.subr.mxu0 0.0
        %304 = vmatpush1.msra.mxu0 0.0
        %305 = vmatprep.subr.mxu0 0.0
        %306 = vmatpush1.msra.mxu0 0.0
        %307 = vmatprep.subr.mxu0 0.0
        %308 = vmatpush1.msra.mxu0 0.0
        %309 = vmatprep.subr.mxu0 0.0
        %310 = vmatpush1.msra.mxu0 0.0
        %311 = vmatprep.subr.mxu0 0.0
        %312 = vmatpush1.msra.mxu0 0.0
        %313 = vmatprep.subr.mxu0 0.0
        %314 = vmatpush1.msra.mxu0 0.0
        %315 = vmatprep.subr.mxu0 0.0
        %316 = vmatpush1.msra.mxu0 0.0
        %317 = vmatprep.subr.mxu0 0.0
        %318 = vmatpush1.msra.mxu0 0.0
        %319 = vmatprep.mubr.f32.mxu0 0.0
        %320 = vmatmul.mubr.f32.gmra.mrb[0].mxu0 %v151
        %v321 = vpop.f32.mrb[0].mxu0
        %v322 = vadd.f32 0.0, %v321
        %v323 = vpop.f32.mrb[0].mxu0
        %v324 = vadd.f32 0.0, %v323
        %325 = vmatprep.mubr.f32.mxu0 0.0
        %326 = vmatmul.mubr.f32.gmra.mrb[0].mxu0 %v154
        %v327 = vpop.f32.mrb[0].mxu0
        %v328 = vadd.f32 0.0, %v327
        %v329 = vpop.f32.mrb[0].mxu0
        %v330 = vadd.f32 0.0, %v329
        %331 = vmatprep.mubr.f32.mxu0 0.0
        %332 = vmatmul.mubr.f32.gmra.mrb[0].mxu0 %v157
        %v333 = vpop.f32.mrb[0].mxu0
        %v334 = vadd.f32 0.0, %v333
        %v335 = vpop.f32.mrb[0].mxu0
        %v336 = vadd.f32 0.0, %v335
        %337 = vdwg.mxu0
        %338 = vxpose.xlu0.b32.start [1/16] %v239, 128
        %339 = vxpose.xlu0.b32.cont [2/16] 0.0, 128
        %340 = vxpose.xlu0.b32.cont [3/16] 0.0, 128
        %341 = vxpose.xlu0.b32.cont [4/16] 0.0, 128
        %342 = vxpose.xlu0.b32.cont [5/16] 0.0, 128
        %343 = vxpose.xlu0.b32.cont [6/16] 0.0, 128
        %344 = vxpose.xlu0.b32.cont [7/16] 0.0, 128
        %345 = vxpose.xlu0.b32.cont [8/16] 0.0, 128
        %346 = vxpose.xlu0.b32.cont [9/16] 0.0, 128
        %347 = vxpose.xlu0.b32.cont [10/16] 0.0, 128
        %348 = vxpose.xlu0.b32.cont [11/16] 0.0, 128
        %349 = vxpose.xlu0.b32.cont [12/16] 0.0, 128
        %350 = vxpose.xlu0.b32.cont [13/16] 0.0, 128
        %351 = vxpose.xlu0.b32.cont [14/16] 0.0, 128
        %352 = vxpose.xlu0.b32.cont [15/16] 0.0, 128
        %353 = vxpose.xlu0.b32.end [16/16] 0.0, 128
        %v354 = vpop.trf.xlu0
        %v355 = vpop.trf.xlu0
        %v356 = vpop.trf.xlu0
        %v357 = vpop.trf.xlu0
        %v358 = vpop.trf.xlu0
        %v359 = vpop.trf.xlu0
        %v360 = vpop.trf.xlu0
        %v361 = vpop.trf.xlu0
        %v362 = vpop.trf.xlu0
        %v363 = vpop.trf.xlu0
        %v364 = vpop.trf.xlu0
        %v365 = vpop.trf.xlu0
        %v366 = vpop.trf.xlu0
        %v367 = vpop.trf.xlu0
        %v368 = vpop.trf.xlu0
        %v369 = vpop.trf.xlu0
        %370 = vxpose.xlu0.b32.start [1/16] %v241, 128
        %371 = vxpose.xlu0.b32.cont [2/16] 0.0, 128
        %372 = vxpose.xlu0.b32.cont [3/16] 0.0, 128
        %373 = vxpose.xlu0.b32.cont [4/16] 0.0, 128
        %374 = vxpose.xlu0.b32.cont [5/16] 0.0, 128
        %375 = vxpose.xlu0.b32.cont [6/16] 0.0, 128
        %376 = vxpose.xlu0.b32.cont [7/16] 0.0, 128
        %377 = vxpose.xlu0.b32.cont [8/16] 0.0, 128
        %378 = vxpose.xlu0.b32.cont [9/16] 0.0, 128
        %379 = vxpose.xlu0.b32.cont [10/16] 0.0, 128
        %380 = vxpose.xlu0.b32.cont [11/16] 0.0, 128
        %381 = vxpose.xlu0.b32.cont [12/16] 0.0, 128
        %382 = vxpose.xlu0.b32.cont [13/16] 0.0, 128
        %383 = vxpose.xlu0.b32.cont [14/16] 0.0, 128
        %384 = vxpose.xlu0.b32.cont [15/16] 0.0, 128
        %385 = vxpose.xlu0.b32.end [16/16] 0.0, 128
        %v386 = vpop.trf.xlu0
        %v387 = vpop.trf.xlu0
        %v388 = vpop.trf.xlu0
        %v389 = vpop.trf.xlu0
        %v390 = vpop.trf.xlu0
        %v391 = vpop.trf.xlu0
        %v392 = vpop.trf.xlu0
        %v393 = vpop.trf.xlu0
        %v394 = vpop.trf.xlu0
        %v395 = vpop.trf.xlu0
        %v396 = vpop.trf.xlu0
        %v397 = vpop.trf.xlu0
        %v398 = vpop.trf.xlu0
        %v399 = vpop.trf.xlu0
        %v400 = vpop.trf.xlu0
        %v401 = vpop.trf.xlu0
        %vm402 = vcmask 64512
        %v404 = vsel %vm402, %v354, 0
        %v407 = vsel %vm402, %v355, 0
        %v410 = vsel %vm402, %v356, 0
        %v413 = vsel %vm402, %v357, 0
        %v416 = vsel %vm402, %v358, 0
        %v419 = vsel %vm402, %v359, 0
        %v422 = vsel %vm402, %v360, 0
        %v425 = vsel %vm402, %v361, 0
        %v428 = vsel %vm402, %v362, 0
        %v431 = vsel %vm402, %v363, 0
        %v434 = vsel %vm402, %v364, 0
        %v437 = vsel %vm402, %v365, 0
        %v440 = vsel %vm402, %v366, 0
        %v443 = vsel %vm402, %v367, 0
        %v446 = vsel %vm402, %v368, 0
        %v449 = vsel %vm402, %v369, 0
        %v452 = vsel %vm402, %v386, 0
        %v455 = vsel %vm402, %v387, 0
        %v458 = vsel %vm402, %v388, 0
        %v461 = vsel %vm402, %v389, 0
        %v464 = vsel %vm402, %v390, 0
        %v467 = vsel %vm402, %v391, 0
        %v470 = vsel %vm402, %v392, 0
        %v473 = vsel %vm402, %v393, 0
        %v476 = vsel %vm402, %v394, 0
        %v479 = vsel %vm402, %v395, 0
        %v482 = vsel %vm402, %v396, 0
        %v485 = vsel %vm402, %v397, 0
        %v488 = vsel %vm402, %v398, 0
        %v491 = vsel %vm402, %v399, 0
        %v494 = vsel %vm402, %v400, 0
        %v497 = vsel %vm402, %v401, 0
        %499 = vmatprep.subr.mxu0 %v330
        %500 = vmatpush1.msra.mxu0 %v328
        %501 = vmatprep.subr.mxu0 0.0
        %502 = vmatpush1.msra.mxu0 0.0
        %503 = vmatprep.subr.mxu0 0.0
        %504 = vmatpush1.msra.mxu0 0.0
        %505 = vmatprep.subr.mxu0 0.0
        %506 = vmatpush1.msra.mxu0 0.0
        %507 = vmatprep.subr.mxu0 0.0
        %508 = vmatpush1.msra.mxu0 0.0
        %509 = vmatprep.subr.mxu0 0.0
        %510 = vmatpush1.msra.mxu0 0.0
        %511 = vmatprep.subr.mxu0 0.0
        %512 = vmatpush1.msra.mxu0 0.0
        %513 = vmatprep.subr.mxu0 0.0
        %514 = vmatpush1.msra.mxu0 0.0
        %515 = vmatprep.subr.mxu0 0.0
        %516 = vmatpush1.msra.mxu0 0.0
        %517 = vmatprep.subr.mxu0 0.0
        %518 = vmatpush1.msra.mxu0 0.0
        %519 = vmatprep.subr.mxu0 0.0
        %520 = vmatpush1.msra.mxu0 0.0
        %521 = vmatprep.subr.mxu0 0.0
        %522 = vmatpush1.msra.mxu0 0.0
        %523 = vmatprep.subr.mxu0 0.0
        %524 = vmatpush1.msra.mxu0 0.0
        %525 = vmatprep.subr.mxu0 0.0
        %526 = vmatpush1.msra.mxu0 0.0
        %527 = vmatprep.subr.mxu0 0.0
        %528 = vmatpush1.msra.mxu0 0.0
        %529 = vmatprep.subr.mxu0 0.0
        %530 = vmatpush1.msra.mxu0 0.0
        %531 = vmatprep.subr.mxu0 0.0
        %532 = vmatpush1.msra.mxu0 0.0
        %533 = vmatprep.subr.mxu0 0.0
        %534 = vmatpush1.msra.mxu0 0.0
        %535 = vmatprep.subr.mxu0 0.0
        %536 = vmatpush1.msra.mxu0 0.0
        %537 = vmatprep.subr.mxu0 0.0
        %538 = vmatpush1.msra.mxu0 0.0
        %539 = vmatprep.subr.mxu0 0.0
        %540 = vmatpush1.msra.mxu0 0.0
        %541 = vmatprep.subr.mxu0 0.0
        %542 = vmatpush1.msra.mxu0 0.0
        %543 = vmatprep.subr.mxu0 0.0
        %544 = vmatpush1.msra.mxu0 0.0
        %545 = vmatprep.subr.mxu0 0.0
        %546 = vmatpush1.msra.mxu0 0.0
        %547 = vmatprep.subr.mxu0 0.0
        %548 = vmatpush1.msra.mxu0 0.0
        %549 = vmatprep.subr.mxu0 0.0
        %550 = vmatpush1.msra.mxu0 0.0
        %551 = vmatprep.subr.mxu0 0.0
        %552 = vmatpush1.msra.mxu0 0.0
        %553 = vmatprep.subr.mxu0 0.0
        %554 = vmatpush1.msra.mxu0 0.0
        %555 = vmatprep.subr.mxu0 0.0
        %556 = vmatpush1.msra.mxu0 0.0
        %557 = vmatprep.subr.mxu0 0.0
        %558 = vmatpush1.msra.mxu0 0.0
        %559 = vmatprep.subr.mxu0 0.0
        %560 = vmatpush1.msra.mxu0 0.0
        %561 = vmatprep.subr.mxu0 0.0
        %562 = vmatpush1.msra.mxu0 0.0
        %563 = vmatprep.mubr.f32.mxu0 0.0
        %564 = vmatmul.mubr.f32.gmra.mrb[0].mxu0 %v404
        %v565 = vpop.f32.mrb[0].mxu0
        %v566 = vadd.f32 0.0, %v565
        %v567 = vpop.f32.mrb[0].mxu0
        %v568 = vadd.f32 0.0, %v567
        %569 = vmatprep.mubr.f32.mxu0 0.0
        %570 = vmatmul.mubr.f32.gmra.mrb[0].mxu0 %v407
        %v571 = vpop.f32.mrb[0].mxu0
        %v572 = vadd.f32 0.0, %v571
        %v573 = vpop.f32.mrb[0].mxu0
        %v574 = vadd.f32 0.0, %v573
        %575 = vmatprep.mubr.f32.mxu0 0.0
        %576 = vmatmul.mubr.f32.gmra.mrb[0].mxu0 %v410
        %v577 = vpop.f32.mrb[0].mxu0
        %v578 = vadd.f32 0.0, %v577
        %v579 = vpop.f32.mrb[0].mxu0
        %v580 = vadd.f32 0.0, %v579
        %581 = vmatprep.mubr.f32.mxu0 0.0
        %582 = vmatmul.mubr.f32.gmra.mrb[0].mxu0 %v413
        %v583 = vpop.f32.mrb[0].mxu0
        %v584 = vadd.f32 0.0, %v583
        %v585 = vpop.f32.mrb[0].mxu0
        %v586 = vadd.f32 0.0, %v585
        %587 = vmatprep.mubr.f32.mxu0 0.0
        %588 = vmatmul.mubr.f32.gmra.mrb[0].mxu0 %v416
        %v589 = vpop.f32.mrb[0].mxu0
        %v590 = vadd.f32 0.0, %v589
        %v591 = vpop.f32.mrb[0].mxu0
        %v592 = vadd.f32 0.0, %v591
        %593 = vmatprep.mubr.f32.mxu0 0.0
        %594 = vmatmul.mubr.f32.gmra.mrb[0].mxu0 %v419
        %v595 = vpop.f32.mrb[0].mxu0
        %v596 = vadd.f32 0.0, %v595
        %v597 = vpop.f32.mrb[0].mxu0
        %v598 = vadd.f32 0.0, %v597
        %599 = vmatprep.mubr.f32.mxu0 0.0
        %600 = vmatmul.mubr.f32.gmra.mrb[0].mxu0 %v422
        %v601 = vpop.f32.mrb[0].mxu0
        %v602 = vadd.f32 0.0, %v601
        %v603 = vpop.f32.mrb[0].mxu0
        %v604 = vadd.f32 0.0, %v603
        %605 = vmatprep.mubr.f32.mxu0 0.0
        %606 = vmatmul.mubr.f32.gmra.mrb[0].mxu0 %v425
        %v607 = vpop.f32.mrb[0].mxu0
        %v608 = vadd.f32 0.0, %v607
        %v609 = vpop.f32.mrb[0].mxu0
        %v610 = vadd.f32 0.0, %v609
        %611 = vmatprep.mubr.f32.mxu0 0.0
        %612 = vmatmul.mubr.f32.gmra.mrb[0].mxu0 %v428
        %v613 = vpop.f32.mrb[0].mxu0
        %v614 = vadd.f32 0.0, %v613
        %v615 = vpop.f32.mrb[0].mxu0
        %v616 = vadd.f32 0.0, %v615
        %617 = vmatprep.mubr.f32.mxu0 0.0
        %618 = vmatmul.mubr.f32.gmra.mrb[0].mxu0 %v431
        %v619 = vpop.f32.mrb[0].mxu0
        %v620 = vadd.f32 0.0, %v619
        %v621 = vpop.f32.mrb[0].mxu0
        %v622 = vadd.f32 0.0, %v621
        %623 = vmatprep.mubr.f32.mxu0 0.0
        %624 = vmatmul.mubr.f32.gmra.mrb[0].mxu0 %v434
        %v625 = vpop.f32.mrb[0].mxu0
        %v626 = vadd.f32 0.0, %v625
        %v627 = vpop.f32.mrb[0].mxu0
        %v628 = vadd.f32 0.0, %v627
        %629 = vmatprep.mubr.f32.mxu0 0.0
        %630 = vmatmul.mubr.f32.gmra.mrb[0].mxu0 %v437
        %v631 = vpop.f32.mrb[0].mxu0
        %v632 = vadd.f32 0.0, %v631
        %v633 = vpop.f32.mrb[0].mxu0
        %v634 = vadd.f32 0.0, %v633
        %635 = vmatprep.mubr.f32.mxu0 0.0
        %636 = vmatmul.mubr.f32.gmra.mrb[0].mxu0 %v440
        %v637 = vpop.f32.mrb[0].mxu0
        %v638 = vadd.f32 0.0, %v637
        %v639 = vpop.f32.mrb[0].mxu0
        %v640 = vadd.f32 0.0, %v639
        %641 = vmatprep.mubr.f32.mxu0 0.0
        %642 = vmatmul.mubr.f32.gmra.mrb[0].mxu0 %v443
        %v643 = vpop.f32.mrb[0].mxu0
        %v644 = vadd.f32 0.0, %v643
        %v645 = vpop.f32.mrb[0].mxu0
        %v646 = vadd.f32 0.0, %v645
        %647 = vmatprep.mubr.f32.mxu0 0.0
        %648 = vmatmul.mubr.f32.gmra.mrb[0].mxu0 %v446
        %v649 = vpop.f32.mrb[0].mxu0
        %v650 = vadd.f32 0.0, %v649
        %v651 = vpop.f32.mrb[0].mxu0
        %v652 = vadd.f32 0.0, %v651
        %653 = vmatprep.mubr.f32.mxu0 0.0
        %654 = vmatmul.mubr.f32.gmra.mrb[0].mxu0 %v449
        %v655 = vpop.f32.mrb[0].mxu0
        %v656 = vadd.f32 0.0, %v655
        %v657 = vpop.f32.mrb[0].mxu0
        %v658 = vadd.f32 0.0, %v657
        %659 = vmatprep.mubr.f32.mxu0 0.0
        %660 = vmatmul.mubr.f32.gmra.mrb[0].mxu0 %v452
        %v661 = vpop.f32.mrb[0].mxu0
        %v662 = vadd.f32 0.0, %v661
        %v663 = vpop.f32.mrb[0].mxu0
        %v664 = vadd.f32 0.0, %v663
        %665 = vmatprep.mubr.f32.mxu0 0.0
        %666 = vmatmul.mubr.f32.gmra.mrb[0].mxu0 %v455
        %v667 = vpop.f32.mrb[0].mxu0
        %v668 = vadd.f32 0.0, %v667
        %v669 = vpop.f32.mrb[0].mxu0
        %v670 = vadd.f32 0.0, %v669
        %671 = vmatprep.mubr.f32.mxu0 0.0
        %672 = vmatmul.mubr.f32.gmra.mrb[0].mxu0 %v458
        %v673 = vpop.f32.mrb[0].mxu0
        %v674 = vadd.f32 0.0, %v673
        %v675 = vpop.f32.mrb[0].mxu0
        %v676 = vadd.f32 0.0, %v675
        %677 = vmatprep.mubr.f32.mxu0 0.0
        %678 = vmatmul.mubr.f32.gmra.mrb[0].mxu0 %v461
        %v679 = vpop.f32.mrb[0].mxu0
        %v680 = vadd.f32 0.0, %v679
        %v681 = vpop.f32.mrb[0].mxu0
        %v682 = vadd.f32 0.0, %v681
        %683 = vmatprep.mubr.f32.mxu0 0.0
        %684 = vmatmul.mubr.f32.gmra.mrb[0].mxu0 %v464
        %v685 = vpop.f32.mrb[0].mxu0
        %v686 = vadd.f32 0.0, %v685
        %v687 = vpop.f32.mrb[0].mxu0
        %v688 = vadd.f32 0.0, %v687
        %689 = vmatprep.mubr.f32.mxu0 0.0
        %690 = vmatmul.mubr.f32.gmra.mrb[0].mxu0 %v467
        %v691 = vpop.f32.mrb[0].mxu0
        %v692 = vadd.f32 0.0, %v691
        %v693 = vpop.f32.mrb[0].mxu0
        %v694 = vadd.f32 0.0, %v693
        %695 = vmatprep.mubr.f32.mxu0 0.0
        %696 = vmatmul.mubr.f32.gmra.mrb[0].mxu0 %v470
        %v697 = vpop.f32.mrb[0].mxu0
        %v698 = vadd.f32 0.0, %v697
        %v699 = vpop.f32.mrb[0].mxu0
        %v700 = vadd.f32 0.0, %v699
        %701 = vmatprep.mubr.f32.mxu0 0.0
        %702 = vmatmul.mubr.f32.gmra.mrb[0].mxu0 %v473
        %v703 = vpop.f32.mrb[0].mxu0
        %v704 = vadd.f32 0.0, %v703
        %v705 = vpop.f32.mrb[0].mxu0
        %v706 = vadd.f32 0.0, %v705
        %707 = vmatprep.mubr.f32.mxu0 0.0
        %708 = vmatmul.mubr.f32.gmra.mrb[0].mxu0 %v476
        %v709 = vpop.f32.mrb[0].mxu0
        %v710 = vadd.f32 0.0, %v709
        %v711 = vpop.f32.mrb[0].mxu0
        %v712 = vadd.f32 0.0, %v711
        %713 = vmatprep.mubr.f32.mxu0 0.0
        %714 = vmatmul.mubr.f32.gmra.mrb[0].mxu0 %v479
        %v715 = vpop.f32.mrb[0].mxu0
        %v716 = vadd.f32 0.0, %v715
        %v717 = vpop.f32.mrb[0].mxu0
        %v718 = vadd.f32 0.0, %v717
        %719 = vmatprep.mubr.f32.mxu0 0.0
        %720 = vmatmul.mubr.f32.gmra.mrb[0].mxu0 %v482
        %v721 = vpop.f32.mrb[0].mxu0
        %v722 = vadd.f32 0.0, %v721
        %v723 = vpop.f32.mrb[0].mxu0
        %v724 = vadd.f32 0.0, %v723
        %725 = vmatprep.mubr.f32.mxu0 0.0
        %726 = vmatmul.mubr.f32.gmra.mrb[0].mxu0 %v485
        %v727 = vpop.f32.mrb[0].mxu0
        %v728 = vadd.f32 0.0, %v727
        %v729 = vpop.f32.mrb[0].mxu0
        %v730 = vadd.f32 0.0, %v729
        %731 = vmatprep.mubr.f32.mxu0 0.0
        %732 = vmatmul.mubr.f32.gmra.mrb[0].mxu0 %v488
        %v733 = vpop.f32.mrb[0].mxu0
        %v734 = vadd.f32 0.0, %v733
        %v735 = vpop.f32.mrb[0].mxu0
        %v736 = vadd.f32 0.0, %v735
        %737 = vmatprep.mubr.f32.mxu0 0.0
        %738 = vmatmul.mubr.f32.gmra.mrb[0].mxu0 %v491
        %v739 = vpop.f32.mrb[0].mxu0
        %v740 = vadd.f32 0.0, %v739
        %v741 = vpop.f32.mrb[0].mxu0
        %v742 = vadd.f32 0.0, %v741
        %743 = vmatprep.mubr.f32.mxu0 0.0
        %744 = vmatmul.mubr.f32.gmra.mrb[0].mxu0 %v494
        %v745 = vpop.f32.mrb[0].mxu0
        %v746 = vadd.f32 0.0, %v745
        %v747 = vpop.f32.mrb[0].mxu0
        %v748 = vadd.f32 0.0, %v747
        %749 = vmatprep.mubr.f32.mxu0 0.0
        %750 = vmatmul.mubr.f32.gmra.mrb[0].mxu0 %v497
        %v751 = vpop.f32.mrb[0].mxu0
        %v752 = vadd.f32 0.0, %v751
        %v753 = vpop.f32.mrb[0].mxu0
        %v754 = vadd.f32 0.0, %v753
        %755 = vdwg.mxu0
        %v756 = vmax.f32 %v566, %v568
        %757 = vmax.xlane.f32.xlu0 %v756
        %v758 = vpop.xlane.xlu0 %757
        %v759 = vmax.f32 %v572, %v574
        %760 = vmax.xlane.f32.xlu0 %v759
        %v761 = vpop.xlane.xlu0 %760
        %v762 = vmax.f32 %v578, %v580
        %763 = vmax.xlane.f32.xlu0 %v762
        %v764 = vpop.xlane.xlu0 %763
        %v765 = vmax.f32 %v584, %v586
        %766 = vmax.xlane.f32.xlu0 %v765
        %v767 = vpop.xlane.xlu0 %766
        %v768 = vmax.f32 %v590, %v592
        %769 = vmax.xlane.f32.xlu0 %v768
        %v770 = vpop.xlane.xlu0 %769
        %v771 = vmax.f32 %v596, %v598
        %772 = vmax.xlane.f32.xlu0 %v771
        %v773 = vpop.xlane.xlu0 %772
        %v774 = vmax.f32 %v602, %v604
        %775 = vmax.xlane.f32.xlu0 %v774
        %v776 = vpop.xlane.xlu0 %775
        %v777 = vmax.f32 %v608, %v610
        %778 = vmax.xlane.f32.xlu0 %v777
        %v779 = vpop.xlane.xlu0 %778
        %v780 = vmax.f32 %v614, %v616
        %781 = vmax.xlane.f32.xlu0 %v780
        %v782 = vpop.xlane.xlu0 %781
        %v783 = vmax.f32 %v620, %v622
        %784 = vmax.xlane.f32.xlu0 %v783
        %v785 = vpop.xlane.xlu0 %784
        %v786 = vmax.f32 %v626, %v628
        %787 = vmax.xlane.f32.xlu0 %v786
        %v788 = vpop.xlane.xlu0 %787
        %v789 = vmax.f32 %v632, %v634
        %790 = vmax.xlane.f32.xlu0 %v789
        %v791 = vpop.xlane.xlu0 %790
        %v792 = vmax.f32 %v638, %v640
        %793 = vmax.xlane.f32.xlu0 %v792
        %v794 = vpop.xlane.xlu0 %793
        %v795 = vmax.f32 %v644, %v646
        %796 = vmax.xlane.f32.xlu0 %v795
        %v797 = vpop.xlane.xlu0 %796
        %v798 = vmax.f32 %v650, %v652
        %799 = vmax.xlane.f32.xlu0 %v798
        %v800 = vpop.xlane.xlu0 %799
        %v801 = vmax.f32 %v656, %v658
        %802 = vmax.xlane.f32.xlu0 %v801
        %v803 = vpop.xlane.xlu0 %802
        %v804 = vmax.f32 %v662, %v664
        %805 = vmax.xlane.f32.xlu0 %v804
        %v806 = vpop.xlane.xlu0 %805
        %v807 = vmax.f32 %v668, %v670
        %808 = vmax.xlane.f32.xlu0 %v807
        %v809 = vpop.xlane.xlu0 %808
        %v810 = vmax.f32 %v674, %v676
        %811 = vmax.xlane.f32.xlu0 %v810
        %v812 = vpop.xlane.xlu0 %811
        %v813 = vmax.f32 %v680, %v682
        %814 = vmax.xlane.f32.xlu0 %v813
        %v815 = vpop.xlane.xlu0 %814
        %v816 = vmax.f32 %v686, %v688
        %817 = vmax.xlane.f32.xlu0 %v816
        %v818 = vpop.xlane.xlu0 %817
        %v819 = vmax.f32 %v692, %v694
        %820 = vmax.xlane.f32.xlu0 %v819
        %v821 = vpop.xlane.xlu0 %820
        %v822 = vmax.f32 %v698, %v700
        %823 = vmax.xlane.f32.xlu0 %v822
        %v824 = vpop.xlane.xlu0 %823
        %v825 = vmax.f32 %v704, %v706
        %826 = vmax.xlane.f32.xlu0 %v825
        %v827 = vpop.xlane.xlu0 %826
        %v828 = vmax.f32 %v710, %v712
        %829 = vmax.xlane.f32.xlu0 %v828
        %v830 = vpop.xlane.xlu0 %829
        %v831 = vmax.f32 %v716, %v718
        %832 = vmax.xlane.f32.xlu0 %v831
        %v833 = vpop.xlane.xlu0 %832
        %v834 = vmax.f32 %v722, %v724
        %835 = vmax.xlane.f32.xlu0 %v834
        %v836 = vpop.xlane.xlu0 %835
        %v837 = vmax.f32 %v728, %v730
        %838 = vmax.xlane.f32.xlu0 %v837
        %v839 = vpop.xlane.xlu0 %838
        %v840 = vmax.f32 %v734, %v736
        %841 = vmax.xlane.f32.xlu0 %v840
        %v842 = vpop.xlane.xlu0 %841
        %v843 = vmax.f32 %v740, %v742
        %844 = vmax.xlane.f32.xlu0 %v843
        %v845 = vpop.xlane.xlu0 %844
        %v846 = vmax.f32 %v746, %v748
        %847 = vmax.xlane.f32.xlu0 %v846
        %v848 = vpop.xlane.xlu0 %847
        %v849 = vmax.f32 %v752, %v754
        %850 = vmax.xlane.f32.xlu0 %v849
        %v851 = vpop.xlane.xlu0 %850
        %v852 = vsub.f32 %v566, %v758
        %v853 = vsub.f32 %v568, %v758
        %v854 = vsub.f32 %v572, %v761
        %v855 = vsub.f32 %v574, %v761
        %v856 = vsub.f32 %v578, %v764
        %v857 = vsub.f32 %v580, %v764
        %v858 = vsub.f32 %v584, %v767
        %v859 = vsub.f32 %v586, %v767
        %v860 = vsub.f32 %v590, %v770
        %v861 = vsub.f32 %v592, %v770
        %v862 = vsub.f32 %v596, %v773
        %v863 = vsub.f32 %v598, %v773
        %v864 = vsub.f32 %v602, %v776
        %v865 = vsub.f32 %v604, %v776
        %v866 = vsub.f32 %v608, %v779
        %v867 = vsub.f32 %v610, %v779
        %v868 = vsub.f32 %v614, %v782
        %v869 = vsub.f32 %v616, %v782
        %v870 = vsub.f32 %v620, %v785
        %v871 = vsub.f32 %v622, %v785
        %v872 = vsub.f32 %v626, %v788
        %v873 = vsub.f32 %v628, %v788
        %v874 = vsub.f32 %v632, %v791
        %v875 = vsub.f32 %v634, %v791
        %v876 = vsub.f32 %v638, %v794
        %v877 = vsub.f32 %v640, %v794
        %v878 = vsub.f32 %v644, %v797
        %v879 = vsub.f32 %v646, %v797
        %v880 = vsub.f32 %v650, %v800
        %v881 = vsub.f32 %v652, %v800
        %v882 = vsub.f32 %v656, %v803
        %v883 = vsub.f32 %v658, %v803
        %v884 = vsub.f32 %v662, %v806
        %v885 = vsub.f32 %v664, %v806
        %v886 = vsub.f32 %v668, %v809
        %v887 = vsub.f32 %v670, %v809
        %v888 = vsub.f32 %v674, %v812
        %v889 = vsub.f32 %v676, %v812
        %v890 = vsub.f32 %v680, %v815
        %v891 = vsub.f32 %v682, %v815
        %v892 = vsub.f32 %v686, %v818
        %v893 = vsub.f32 %v688, %v818
        %v894 = vsub.f32 %v692, %v821
        %v895 = vsub.f32 %v694, %v821
        %v896 = vsub.f32 %v698, %v824
        %v897 = vsub.f32 %v700, %v824
        %v898 = vsub.f32 %v704, %v827
        %v899 = vsub.f32 %v706, %v827
        %v900 = vsub.f32 %v710, %v830
        %v901 = vsub.f32 %v712, %v830
        %v902 = vsub.f32 %v716, %v833
        %v903 = vsub.f32 %v718, %v833
        %v904 = vsub.f32 %v722, %v836
        %v905 = vsub.f32 %v724, %v836
        %v906 = vsub.f32 %v728, %v839
        %v907 = vsub.f32 %v730, %v839
        %v908 = vsub.f32 %v734, %v842
        %v909 = vsub.f32 %v736, %v842
        %v910 = vsub.f32 %v740, %v845
        %v911 = vsub.f32 %v742, %v845
        %v912 = vsub.f32 %v746, %v848
        %v913 = vsub.f32 %v748, %v848
        %v914 = vsub.f32 %v752, %v851
        %v915 = vsub.f32 %v754, %v851
        %v916 = vmul.f32 %v852, 1.442695
        %v917 = vpow.pop %v916
        %v918 = vmul.f32 %v853, 1.442695
        %v919 = vpow.pop %v918
        %v920 = vmul.f32 %v854, 1.442695
        %v921 = vpow.pop %v920
        %v922 = vmul.f32 %v855, 1.442695
        %v923 = vpow.pop %v922
        %v924 = vmul.f32 %v856, 1.442695
        %v925 = vpow.pop %v924
        %v926 = vmul.f32 %v857, 1.442695
        %v927 = vpow.pop %v926
        %v928 = vmul.f32 %v858, 1.442695
        %v929 = vpow.pop %v928
        %v930 = vmul.f32 %v859, 1.442695
        %v931 = vpow.pop %v930
        %v932 = vmul.f32 %v860, 1.442695
        %v933 = vpow.pop %v932
        %v934 = vmul.f32 %v861, 1.442695
        %v935 = vpow.pop %v934
        %v936 = vmul.f32 %v862, 1.442695
        %v937 = vpow.pop %v936
        %v938 = vmul.f32 %v863, 1.442695
        %v939 = vpow.pop %v938
        %v940 = vmul.f32 %v864, 1.442695
        %v941 = vpow.pop %v940
        %v942 = vmul.f32 %v865, 1.442695
        %v943 = vpow.pop %v942
        %v944 = vmul.f32 %v866, 1.442695
        %v945 = vpow.pop %v944
        %v946 = vmul.f32 %v867, 1.442695
        %v947 = vpow.pop %v946
        %v948 = vmul.f32 %v868, 1.442695
        %v949 = vpow.pop %v948
        %v950 = vmul.f32 %v869, 1.442695
        %v951 = vpow.pop %v950
        %v952 = vmul.f32 %v870, 1.442695
        %v953 = vpow.pop %v952
        %v954 = vmul.f32 %v871, 1.442695
        %v955 = vpow.pop %v954
        %v956 = vmul.f32 %v872, 1.442695
        %v957 = vpow.pop %v956
        %v958 = vmul.f32 %v873, 1.442695
        %v959 = vpow.pop %v958
        %v960 = vmul.f32 %v874, 1.442695
        %v961 = vpow.pop %v960
        %v962 = vmul.f32 %v875, 1.442695
        %v963 = vpow.pop %v962
        %v964 = vmul.f32 %v876, 1.442695
        %v965 = vpow.pop %v964
        %v966 = vmul.f32 %v877, 1.442695
        %v967 = vpow.pop %v966
        %v968 = vmul.f32 %v878, 1.442695
        %v969 = vpow.pop %v968
        %v970 = vmul.f32 %v879, 1.442695
        %v971 = vpow.pop %v970
        %v972 = vmul.f32 %v880, 1.442695
        %v973 = vpow.pop %v972
        %v974 = vmul.f32 %v881, 1.442695
        %v975 = vpow.pop %v974
        %v976 = vmul.f32 %v882, 1.442695
        %v977 = vpow.pop %v976
        %v978 = vmul.f32 %v883, 1.442695
        %v979 = vpow.pop %v978
        %v980 = vmul.f32 %v884, 1.442695
        %v981 = vpow.pop %v980
        %v982 = vmul.f32 %v885, 1.442695
        %v983 = vpow.pop %v982
        %v984 = vmul.f32 %v886, 1.442695
        %v985 = vpow.pop %v984
        %v986 = vmul.f32 %v887, 1.442695
        %v987 = vpow.pop %v986
        %v988 = vmul.f32 %v888, 1.442695
        %v989 = vpow.pop %v988
        %v990 = vmul.f32 %v889, 1.442695
        %v991 = vpow.pop %v990
        %v992 = vmul.f32 %v890, 1.442695
        %v993 = vpow.pop %v992
        %v994 = vmul.f32 %v891, 1.442695
        %v995 = vpow.pop %v994
        %v996 = vmul.f32 %v892, 1.442695
        %v997 = vpow.pop %v996
        %v998 = vmul.f32 %v893, 1.442695
        %v999 = vpow.pop %v998
        %v1000 = vmul.f32 %v894, 1.442695
        %v1001 = vpow.pop %v1000
        %v1002 = vmul.f32 %v895, 1.442695
        %v1003 = vpow.pop %v1002
        %v1004 = vmul.f32 %v896, 1.442695
        %v1005 = vpow.pop %v1004
        %v1006 = vmul.f32 %v897, 1.442695
        %v1007 = vpow.pop %v1006
        %v1008 = vmul.f32 %v898, 1.442695
        %v1009 = vpow.pop %v1008
        %v1010 = vmul.f32 %v899, 1.442695
        %v1011 = vpow.pop %v1010
        %v1012 = vmul.f32 %v900, 1.442695
        %v1013 = vpow.pop %v1012
        %v1014 = vmul.f32 %v901, 1.442695
        %v1015 = vpow.pop %v1014
        %v1016 = vmul.f32 %v902, 1.442695
        %v1017 = vpow.pop %v1016
        %v1018 = vmul.f32 %v903, 1.442695
        %v1019 = vpow.pop %v1018
        %v1020 = vmul.f32 %v904, 1.442695
        %v1021 = vpow.pop %v1020
        %v1022 = vmul.f32 %v905, 1.442695
        %v1023 = vpow.pop %v1022
        %v1024 = vmul.f32 %v906, 1.442695
        %v1025 = vpow.pop %v1024
        %v1026 = vmul.f32 %v907, 1.442695
        %v1027 = vpow.pop %v1026
        %v1028 = vmul.f32 %v908, 1.442695
        %v1029 = vpow.pop %v1028
        %v1030 = vmul.f32 %v909, 1.442695
        %v1031 = vpow.pop %v1030
        %v1032 = vmul.f32 %v910, 1.442695
        %v1033 = vpow.pop %v1032
        %v1034 = vmul.f32 %v911, 1.442695
        %v1035 = vpow.pop %v1034
        %v1036 = vmul.f32 %v912, 1.442695
        %v1037 = vpow.pop %v1036
        %v1038 = vmul.f32 %v913, 1.442695
        %v1039 = vpow.pop %v1038
        %v1040 = vmul.f32 %v914, 1.442695
        %v1041 = vpow.pop %v1040
        %v1042 = vmul.f32 %v915, 1.442695
        %v1043 = vpow.pop %v1042
        %v1044 = vadd.f32 %v917, %v919
        %1045 = vadd.xlane.f32.xlu0 %v1044
        %v1046 = vpop.xlane.xlu0 %1045
        %v1047 = vadd.f32 %v921, %v923
        %1048 = vadd.xlane.f32.xlu0 %v1047
        %v1049 = vpop.xlane.xlu0 %1048
        %v1050 = vadd.f32 %v925, %v927
        %1051 = vadd.xlane.f32.xlu0 %v1050
        %v1052 = vpop.xlane.xlu0 %1051
        %v1053 = vadd.f32 %v929, %v931
        %1054 = vadd.xlane.f32.xlu0 %v1053
        %v1055 = vpop.xlane.xlu0 %1054
        %v1056 = vadd.f32 %v933, %v935
        %1057 = vadd.xlane.f32.xlu0 %v1056
        %v1058 = vpop.xlane.xlu0 %1057
        %v1059 = vadd.f32 %v937, %v939
        %1060 = vadd.xlane.f32.xlu0 %v1059
        %v1061 = vpop.xlane.xlu0 %1060
        %v1062 = vadd.f32 %v941, %v943
        %1063 = vadd.xlane.f32.xlu0 %v1062
        %v1064 = vpop.xlane.xlu0 %1063
        %v1065 = vadd.f32 %v945, %v947
        %1066 = vadd.xlane.f32.xlu0 %v1065
        %v1067 = vpop.xlane.xlu0 %1066
        %v1068 = vadd.f32 %v949, %v951
        %1069 = vadd.xlane.f32.xlu0 %v1068
        %v1070 = vpop.xlane.xlu0 %1069
        %v1071 = vadd.f32 %v953, %v955
        %1072 = vadd.xlane.f32.xlu0 %v1071
        %v1073 = vpop.xlane.xlu0 %1072
        %v1074 = vadd.f32 %v957, %v959
        %1075 = vadd.xlane.f32.xlu0 %v1074
        %v1076 = vpop.xlane.xlu0 %1075
        %v1077 = vadd.f32 %v961, %v963
        %1078 = vadd.xlane.f32.xlu0 %v1077
        %v1079 = vpop.xlane.xlu0 %1078
        %v1080 = vadd.f32 %v965, %v967
        %1081 = vadd.xlane.f32.xlu0 %v1080
        %v1082 = vpop.xlane.xlu0 %1081
        %v1083 = vadd.f32 %v969, %v971
        %1084 = vadd.xlane.f32.xlu0 %v1083
        %v1085 = vpop.xlane.xlu0 %1084
        %v1086 = vadd.f32 %v973, %v975
        %1087 = vadd.xlane.f32.xlu0 %v1086
        %v1088 = vpop.xlane.xlu0 %1087
        %v1089 = vadd.f32 %v977, %v979
        %1090 = vadd.xlane.f32.xlu0 %v1089
        %v1091 = vpop.xlane.xlu0 %1090
        %v1092 = vadd.f32 %v981, %v983
        %1093 = vadd.xlane.f32.xlu0 %v1092
        %v1094 = vpop.xlane.xlu0 %1093
        %v1095 = vadd.f32 %v985, %v987
        %1096 = vadd.xlane.f32.xlu0 %v1095
        %v1097 = vpop.xlane.xlu0 %1096
        %v1098 = vadd.f32 %v989, %v991
        %1099 = vadd.xlane.f32.xlu0 %v1098
        %v1100 = vpop.xlane.xlu0 %1099
        %v1101 = vadd.f32 %v993, %v995
        %1102 = vadd.xlane.f32.xlu0 %v1101
        %v1103 = vpop.xlane.xlu0 %1102
        %v1104 = vadd.f32 %v997, %v999
        %1105 = vadd.xlane.f32.xlu0 %v1104
        %v1106 = vpop.xlane.xlu0 %1105
        %v1107 = vadd.f32 %v1001, %v1003
        %1108 = vadd.xlane.f32.xlu0 %v1107
        %v1109 = vpop.xlane.xlu0 %1108
        %v1110 = vadd.f32 %v1005, %v1007
        %1111 = vadd.xlane.f32.xlu0 %v1110
        %v1112 = vpop.xlane.xlu0 %1111
        %v1113 = vadd.f32 %v1009, %v1011
        %1114 = vadd.xlane.f32.xlu0 %v1113
        %v1115 = vpop.xlane.xlu0 %1114
        %v1116 = vadd.f32 %v1013, %v1015
        %1117 = vadd.xlane.f32.xlu0 %v1116
        %v1118 = vpop.xlane.xlu0 %1117
        %v1119 = vadd.f32 %v1017, %v1019
        %1120 = vadd.xlane.f32.xlu0 %v1119
        %v1121 = vpop.xlane.xlu0 %1120
        %v1122 = vadd.f32 %v1021, %v1023
        %1123 = vadd.xlane.f32.xlu0 %v1122
        %v1124 = vpop.xlane.xlu0 %1123
        %v1125 = vadd.f32 %v1025, %v1027
        %1126 = vadd.xlane.f32.xlu0 %v1125
        %v1127 = vpop.xlane.xlu0 %1126
        %v1128 = vadd.f32 %v1029, %v1031
        %1129 = vadd.xlane.f32.xlu0 %v1128
        %v1130 = vpop.xlane.xlu0 %1129
        %v1131 = vadd.f32 %v1033, %v1035
        %1132 = vadd.xlane.f32.xlu0 %v1131
        %v1133 = vpop.xlane.xlu0 %1132
        %v1134 = vadd.f32 %v1037, %v1039
        %1135 = vadd.xlane.f32.xlu0 %v1134
        %v1136 = vpop.xlane.xlu0 %1135
        %v1137 = vadd.f32 %v1041, %v1043
        %1138 = vadd.xlane.f32.xlu0 %v1137
        %v1139 = vpop.xlane.xlu0 %1138
        %1140 = vmatprep.subr.mxu0 %v253
        %1141 = vmatpush1.xpose.msra.mxu0 %v251
        %1142 = vmatprep.subr.mxu0 0.0
        %1143 = vmatpush1.xpose.msra.mxu0 0.0
        %1144 = vmatprep.subr.mxu0 0.0
        %1145 = vmatpush1.xpose.msra.mxu0 0.0
        %1146 = vmatprep.subr.mxu0 0.0
        %1147 = vmatpush1.xpose.msra.mxu0 0.0
        %1148 = vmatprep.subr.mxu0 0.0
        %1149 = vmatpush1.xpose.msra.mxu0 0.0
        %1150 = vmatprep.subr.mxu0 0.0
        %1151 = vmatpush1.xpose.msra.mxu0 0.0
        %1152 = vmatprep.subr.mxu0 0.0
        %1153 = vmatpush1.xpose.msra.mxu0 0.0
        %1154 = vmatprep.subr.mxu0 0.0
        %1155 = vmatpush1.xpose.msra.mxu0 0.0
        %1156 = vmatprep.subr.mxu0 0.0
        %1157 = vmatpush1.xpose.msra.mxu0 0.0
        %1158 = vmatprep.subr.mxu0 0.0
        %1159 = vmatpush1.xpose.msra.mxu0 0.0
        %1160 = vmatprep.subr.mxu0 0.0
        %1161 = vmatpush1.xpose.msra.mxu0 0.0
        %1162 = vmatprep.subr.mxu0 0.0
        %1163 = vmatpush1.xpose.msra.mxu0 0.0
        %1164 = vmatprep.subr.mxu0 0.0
        %1165 = vmatpush1.xpose.msra.mxu0 0.0
        %1166 = vmatprep.subr.mxu0 0.0
        %1167 = vmatpush1.xpose.msra.mxu0 0.0
        %1168 = vmatprep.subr.mxu0 0.0
        %1169 = vmatpush1.xpose.msra.mxu0 0.0
        %1170 = vmatprep.subr.mxu0 0.0
        %1171 = vmatpush1.xpose.msra.mxu0 0.0
        %1172 = vmatprep.subr.mxu0 0.0
        %1173 = vmatpush1.xpose.msra.mxu0 0.0
        %1174 = vmatprep.subr.mxu0 0.0
        %1175 = vmatpush1.xpose.msra.mxu0 0.0
        %1176 = vmatprep.subr.mxu0 0.0
        %1177 = vmatpush1.xpose.msra.mxu0 0.0
        %1178 = vmatprep.subr.mxu0 0.0
        %1179 = vmatpush1.xpose.msra.mxu0 0.0
        %1180 = vmatprep.subr.mxu0 0.0
        %1181 = vmatpush1.xpose.msra.mxu0 0.0
        %1182 = vmatprep.subr.mxu0 0.0
        %1183 = vmatpush1.xpose.msra.mxu0 0.0
        %1184 = vmatprep.subr.mxu0 0.0
        %1185 = vmatpush1.xpose.msra.mxu0 0.0
        %1186 = vmatprep.subr.mxu0 0.0
        %1187 = vmatpush1.xpose.msra.mxu0 0.0
        %1188 = vmatprep.subr.mxu0 0.0
        %1189 = vmatpush1.xpose.msra.mxu0 0.0
        %1190 = vmatprep.subr.mxu0 0.0
        %1191 = vmatpush1.xpose.msra.mxu0 0.0
        %1192 = vmatprep.subr.mxu0 0.0
        %1193 = vmatpush1.xpose.msra.mxu0 0.0
        %1194 = vmatprep.subr.mxu0 0.0
        %1195 = vmatpush1.xpose.msra.mxu0 0.0
        %1196 = vmatprep.subr.mxu0 0.0
        %1197 = vmatpush1.xpose.msra.mxu0 0.0
        %1198 = vmatprep.subr.mxu0 0.0
        %1199 = vmatpush1.xpose.msra.mxu0 0.0
        %1200 = vmatprep.subr.mxu0 0.0
        %1201 = vmatpush1.xpose.msra.mxu0 0.0
        %1202 = vmatprep.subr.mxu0 0.0
        %1203 = vmatpush1.xpose.msra.mxu0 0.0
        %1204 = vmatprep.mubr.f32.mxu0 %v919
        %1205 = vmatmul.mubr.f32.gmra.mrb[0].mxu0 %v917
        %v1206 = vpop.f32.mrb[0].mxu0
        %v1207 = vadd.f32 0.0, %v1206
        %v1208 = vpop.f32.mrb[0].mxu0
        %1209 = vmatprep.mubr.f32.mxu0 %v923
        %1210 = vmatmul.mubr.f32.gmra.mrb[0].mxu0 %v921
        %v1211 = vpop.f32.mrb[0].mxu0
        %v1212 = vadd.f32 0.0, %v1211
        %v1213 = vpop.f32.mrb[0].mxu0
        %1214 = vmatprep.mubr.f32.mxu0 %v927
        %1215 = vmatmul.mubr.f32.gmra.mrb[0].mxu0 %v925
        %v1216 = vpop.f32.mrb[0].mxu0
        %v1217 = vadd.f32 0.0, %v1216
        %v1218 = vpop.f32.mrb[0].mxu0
        %1219 = vmatprep.mubr.f32.mxu0 %v931
        %1220 = vmatmul.mubr.f32.gmra.mrb[0].mxu0 %v929
        %v1221 = vpop.f32.mrb[0].mxu0
        %v1222 = vadd.f32 0.0, %v1221
        %v1223 = vpop.f32.mrb[0].mxu0
        %1224 = vmatprep.mubr.f32.mxu0 %v935
        %1225 = vmatmul.mubr.f32.gmra.mrb[0].mxu0 %v933
        %v1226 = vpop.f32.mrb[0].mxu0
        %v1227 = vadd.f32 0.0, %v1226
        %v1228 = vpop.f32.mrb[0].mxu0
        %1229 = vmatprep.mubr.f32.mxu0 %v939
        %1230 = vmatmul.mubr.f32.gmra.mrb[0].mxu0 %v937
        %v1231 = vpop.f32.mrb[0].mxu0
        %v1232 = vadd.f32 0.0, %v1231
        %v1233 = vpop.f32.mrb[0].mxu0
        %1234 = vmatprep.mubr.f32.mxu0 %v943
        %1235 = vmatmul.mubr.f32.gmra.mrb[0].mxu0 %v941
        %v1236 = vpop.f32.mrb[0].mxu0
        %v1237 = vadd.f32 0.0, %v1236
        %v1238 = vpop.f32.mrb[0].mxu0
        %1239 = vmatprep.mubr.f32.mxu0 %v947
        %1240 = vmatmul.mubr.f32.gmra.mrb[0].mxu0 %v945
        %v1241 = vpop.f32.mrb[0].mxu0
        %v1242 = vadd.f32 0.0, %v1241
        %v1243 = vpop.f32.mrb[0].mxu0
        %1244 = vmatprep.mubr.f32.mxu0 %v951
        %1245 = vmatmul.mubr.f32.gmra.mrb[0].mxu0 %v949
        %v1246 = vpop.f32.mrb[0].mxu0
        %v1247 = vadd.f32 0.0, %v1246
        %v1248 = vpop.f32.mrb[0].mxu0
        %1249 = vmatprep.mubr.f32.mxu0 %v955
        %1250 = vmatmul.mubr.f32.gmra.mrb[0].mxu0 %v953
        %v1251 = vpop.f32.mrb[0].mxu0
        %v1252 = vadd.f32 0.0, %v1251
        %v1253 = vpop.f32.mrb[0].mxu0
        %1254 = vmatprep.mubr.f32.mxu0 %v959
        %1255 = vmatmul.mubr.f32.gmra.mrb[0].mxu0 %v957
        %v1256 = vpop.f32.mrb[0].mxu0
        %v1257 = vadd.f32 0.0, %v1256
        %v1258 = vpop.f32.mrb[0].mxu0
        %1259 = vmatprep.mubr.f32.mxu0 %v963
        %1260 = vmatmul.mubr.f32.gmra.mrb[0].mxu0 %v961
        %v1261 = vpop.f32.mrb[0].mxu0
        %v1262 = vadd.f32 0.0, %v1261
        %v1263 = vpop.f32.mrb[0].mxu0
        %1264 = vmatprep.mubr.f32.mxu0 %v967
        %1265 = vmatmul.mubr.f32.gmra.mrb[0].mxu0 %v965
        %v1266 = vpop.f32.mrb[0].mxu0
        %v1267 = vadd.f32 0.0, %v1266
        %v1268 = vpop.f32.mrb[0].mxu0
        %1269 = vmatprep.mubr.f32.mxu0 %v971
        %1270 = vmatmul.mubr.f32.gmra.mrb[0].mxu0 %v969
        %v1271 = vpop.f32.mrb[0].mxu0
        %v1272 = vadd.f32 0.0, %v1271
        %v1273 = vpop.f32.mrb[0].mxu0
        %1274 = vmatprep.mubr.f32.mxu0 %v975
        %1275 = vmatmul.mubr.f32.gmra.mrb[0].mxu0 %v973
        %v1276 = vpop.f32.mrb[0].mxu0
        %v1277 = vadd.f32 0.0, %v1276
        %v1278 = vpop.f32.mrb[0].mxu0
        %1279 = vmatprep.mubr.f32.mxu0 %v979
        %1280 = vmatmul.mubr.f32.gmra.mrb[0].mxu0 %v977
        %v1281 = vpop.f32.mrb[0].mxu0
        %v1282 = vadd.f32 0.0, %v1281
        %v1283 = vpop.f32.mrb[0].mxu0
        %1284 = vmatprep.mubr.f32.mxu0 %v983
        %1285 = vmatmul.mubr.f32.gmra.mrb[0].mxu0 %v981
        %v1286 = vpop.f32.mrb[0].mxu0
        %v1287 = vadd.f32 0.0, %v1286
        %v1288 = vpop.f32.mrb[0].mxu0
        %1289 = vmatprep.mubr.f32.mxu0 %v987
        %1290 = vmatmul.mubr.f32.gmra.mrb[0].mxu0 %v985
        %v1291 = vpop.f32.mrb[0].mxu0
        %v1292 = vadd.f32 0.0, %v1291
        %v1293 = vpop.f32.mrb[0].mxu0
        %1294 = vmatprep.mubr.f32.mxu0 %v991
        %1295 = vmatmul.mubr.f32.gmra.mrb[0].mxu0 %v989
        %v1296 = vpop.f32.mrb[0].mxu0
        %v1297 = vadd.f32 0.0, %v1296
        %v1298 = vpop.f32.mrb[0].mxu0
        %1299 = vmatprep.mubr.f32.mxu0 %v995
        %1300 = vmatmul.mubr.f32.gmra.mrb[0].mxu0 %v993
        %v1301 = vpop.f32.mrb[0].mxu0
        %v1302 = vadd.f32 0.0, %v1301
        %v1303 = vpop.f32.mrb[0].mxu0
        %1304 = vmatprep.mubr.f32.mxu0 %v999
        %1305 = vmatmul.mubr.f32.gmra.mrb[0].mxu0 %v997
        %v1306 = vpop.f32.mrb[0].mxu0
        %v1307 = vadd.f32 0.0, %v1306
        %v1308 = vpop.f32.mrb[0].mxu0
        %1309 = vmatprep.mubr.f32.mxu0 %v1003
        %1310 = vmatmul.mubr.f32.gmra.mrb[0].mxu0 %v1001
        %v1311 = vpop.f32.mrb[0].mxu0
        %v1312 = vadd.f32 0.0, %v1311
        %v1313 = vpop.f32.mrb[0].mxu0
        %1314 = vmatprep.mubr.f32.mxu0 %v1007
        %1315 = vmatmul.mubr.f32.gmra.mrb[0].mxu0 %v1005
        %v1316 = vpop.f32.mrb[0].mxu0
        %v1317 = vadd.f32 0.0, %v1316
        %v1318 = vpop.f32.mrb[0].mxu0
        %1319 = vmatprep.mubr.f32.mxu0 %v1011
        %1320 = vmatmul.mubr.f32.gmra.mrb[0].mxu0 %v1009
        %v1321 = vpop.f32.mrb[0].mxu0
        %v1322 = vadd.f32 0.0, %v1321
        %v1323 = vpop.f32.mrb[0].mxu0
        %1324 = vmatprep.mubr.f32.mxu0 %v1015
        %1325 = vmatmul.mubr.f32.gmra.mrb[0].mxu0 %v1013
        %v1326 = vpop.f32.mrb[0].mxu0
        %v1327 = vadd.f32 0.0, %v1326
        %v1328 = vpop.f32.mrb[0].mxu0
        %1329 = vmatprep.mubr.f32.mxu0 %v1019
        %1330 = vmatmul.mubr.f32.gmra.mrb[0].mxu0 %v1017
        %v1331 = vpop.f32.mrb[0].mxu0
        %v1332 = vadd.f32 0.0, %v1331
        %v1333 = vpop.f32.mrb[0].mxu0
        %1334 = vmatprep.mubr.f32.mxu0 %v1023
        %1335 = vmatmul.mubr.f32.gmra.mrb[0].mxu0 %v1021
        %v1336 = vpop.f32.mrb[0].mxu0
        %v1337 = vadd.f32 0.0, %v1336
        %v1338 = vpop.f32.mrb[0].mxu0
        %1339 = vmatprep.mubr.f32.mxu0 %v1027
        %1340 = vmatmul.mubr.f32.gmra.mrb[0].mxu0 %v1025
        %v1341 = vpop.f32.mrb[0].mxu0
        %v1342 = vadd.f32 0.0, %v1341
        %v1343 = vpop.f32.mrb[0].mxu0
        %1344 = vmatprep.mubr.f32.mxu0 %v1031
        %1345 = vmatmul.mubr.f32.gmra.mrb[0].mxu0 %v1029
        %v1346 = vpop.f32.mrb[0].mxu0
        %v1347 = vadd.f32 0.0, %v1346
        %v1348 = vpop.f32.mrb[0].mxu0
        %1349 = vmatprep.mubr.f32.mxu0 %v1035
        %1350 = vmatmul.mubr.f32.gmra.mrb[0].mxu0 %v1033
        %v1351 = vpop.f32.mrb[0].mxu0
        %v1352 = vadd.f32 0.0, %v1351
        %v1353 = vpop.f32.mrb[0].mxu0
        %1354 = vmatprep.mubr.f32.mxu0 %v1039
        %1355 = vmatmul.mubr.f32.gmra.mrb[0].mxu0 %v1037
        %v1356 = vpop.f32.mrb[0].mxu0
        %v1357 = vadd.f32 0.0, %v1356
        %v1358 = vpop.f32.mrb[0].mxu0
        %1359 = vmatprep.mubr.f32.mxu0 %v1043
        %1360 = vmatmul.mubr.f32.gmra.mrb[0].mxu0 %v1041
        %v1361 = vpop.f32.mrb[0].mxu0
        %v1362 = vadd.f32 0.0, %v1361
        %v1363 = vpop.f32.mrb[0].mxu0
        %1364 = vdwg.mxu0
        %v1365 = vrcp.pop %v1046
        %v1366 = vmul.f32 1.0, %v1365
        %v1367 = vrcp.pop %v1049
        %v1368 = vmul.f32 1.0, %v1367
        %v1369 = vrcp.pop %v1052
        %v1370 = vmul.f32 1.0, %v1369
        %v1371 = vrcp.pop %v1055
        %v1372 = vmul.f32 1.0, %v1371
        %v1373 = vrcp.pop %v1058
        %v1374 = vmul.f32 1.0, %v1373
        %v1375 = vrcp.pop %v1061
        %v1376 = vmul.f32 1.0, %v1375
        %v1377 = vrcp.pop %v1064
        %v1378 = vmul.f32 1.0, %v1377
        %v1379 = vrcp.pop %v1067
        %v1380 = vmul.f32 1.0, %v1379
        %v1381 = vrcp.pop %v1070
        %v1382 = vmul.f32 1.0, %v1381
        %v1383 = vrcp.pop %v1073
        %v1384 = vmul.f32 1.0, %v1383
        %v1385 = vrcp.pop %v1076
        %v1386 = vmul.f32 1.0, %v1385
        %v1387 = vrcp.pop %v1079
        %v1388 = vmul.f32 1.0, %v1387
        %v1389 = vrcp.pop %v1082
        %v1390 = vmul.f32 1.0, %v1389
        %v1391 = vrcp.pop %v1085
        %v1392 = vmul.f32 1.0, %v1391
        %v1393 = vrcp.pop %v1088
        %v1394 = vmul.f32 1.0, %v1393
        %v1395 = vrcp.pop %v1091
        %v1396 = vmul.f32 1.0, %v1395
        %v1397 = vrcp.pop %v1094
        %v1398 = vmul.f32 1.0, %v1397
        %v1399 = vrcp.pop %v1097
        %v1400 = vmul.f32 1.0, %v1399
        %v1401 = vrcp.pop %v1100
        %v1402 = vmul.f32 1.0, %v1401
        %v1403 = vrcp.pop %v1103
        %v1404 = vmul.f32 1.0, %v1403
        %v1405 = vrcp.pop %v1106
        %v1406 = vmul.f32 1.0, %v1405
        %v1407 = vrcp.pop %v1109
        %v1408 = vmul.f32 1.0, %v1407
        %v1409 = vrcp.pop %v1112
        %v1410 = vmul.f32 1.0, %v1409
        %v1411 = vrcp.pop %v1115
        %v1412 = vmul.f32 1.0, %v1411
        %v1413 = vrcp.pop %v1118
        %v1414 = vmul.f32 1.0, %v1413
        %v1415 = vrcp.pop %v1121
        %v1416 = vmul.f32 1.0, %v1415
        %v1417 = vrcp.pop %v1124
        %v1418 = vmul.f32 1.0, %v1417
        %v1419 = vrcp.pop %v1127
        %v1420 = vmul.f32 1.0, %v1419
        %v1421 = vrcp.pop %v1130
        %v1422 = vmul.f32 1.0, %v1421
        %v1423 = vrcp.pop %v1133
        %v1424 = vmul.f32 1.0, %v1423
        %v1425 = vrcp.pop %v1136
        %v1426 = vmul.f32 1.0, %v1425
        %v1427 = vrcp.pop %v1139
        %v1428 = vmul.f32 1.0, %v1427
        %v1429 = vmul.f32 %v1207, %v1366
        %v1430 = vmul.f32 %v1212, %v1368
        %v1431 = vmul.f32 %v1217, %v1370
        %v1432 = vmul.f32 %v1222, %v1372
        %v1433 = vmul.f32 %v1227, %v1374
        %v1434 = vmul.f32 %v1232, %v1376
        %v1435 = vmul.f32 %v1237, %v1378
        %v1436 = vmul.f32 %v1242, %v1380
        %v1437 = vmul.f32 %v1247, %v1382
        %v1438 = vmul.f32 %v1252, %v1384
        %v1439 = vmul.f32 %v1257, %v1386
        %v1440 = vmul.f32 %v1262, %v1388
        %v1441 = vmul.f32 %v1267, %v1390
        %v1442 = vmul.f32 %v1272, %v1392
        %v1443 = vmul.f32 %v1277, %v1394
        %v1444 = vmul.f32 %v1282, %v1396
        %v1445 = vmul.f32 %v1287, %v1398
        %v1446 = vmul.f32 %v1292, %v1400
        %v1447 = vmul.f32 %v1297, %v1402
        %v1448 = vmul.f32 %v1302, %v1404
        %v1449 = vmul.f32 %v1307, %v1406
        %v1450 = vmul.f32 %v1312, %v1408
        %v1451 = vmul.f32 %v1317, %v1410
        %v1452 = vmul.f32 %v1322, %v1412
        %v1453 = vmul.f32 %v1327, %v1414
        %v1454 = vmul.f32 %v1332, %v1416
        %v1455 = vmul.f32 %v1337, %v1418
        %v1456 = vmul.f32 %v1342, %v1420
        %v1457 = vmul.f32 %v1347, %v1422
        %v1458 = vmul.f32 %v1352, %v1424
        %v1459 = vmul.f32 %v1357, %v1426
        %v1460 = vmul.f32 %v1362, %v1428
        %1461 = vxpose.xlu0.b32.start [1/16] %v1429, 128
        %1462 = vxpose.xlu0.b32.cont [2/16] %v1430, 128
        %1463 = vxpose.xlu0.b32.cont [3/16] %v1431, 128
        %1464 = vxpose.xlu0.b32.cont [4/16] %v1432, 128
        %1465 = vxpose.xlu0.b32.cont [5/16] %v1433, 128
        %1466 = vxpose.xlu0.b32.cont [6/16] %v1434, 128
        %1467 = vxpose.xlu0.b32.cont [7/16] %v1435, 128
        %1468 = vxpose.xlu0.b32.cont [8/16] %v1436, 128
        %1469 = vxpose.xlu0.b32.cont [9/16] %v1437, 128
        %1470 = vxpose.xlu0.b32.cont [10/16] %v1438, 128
        %1471 = vxpose.xlu0.b32.cont [11/16] %v1439, 128
        %1472 = vxpose.xlu0.b32.cont [12/16] %v1440, 128
        %1473 = vxpose.xlu0.b32.cont [13/16] %v1441, 128
        %1474 = vxpose.xlu0.b32.cont [14/16] %v1442, 128
        %1475 = vxpose.xlu0.b32.cont [15/16] %v1443, 128
        %1476 = vxpose.xlu0.b32.end [16/16] %v1444, 128
        %v1477 = vpop.trf.xlu0
        %v1478 = vpop.trf.xlu0
        %v1479 = vpop.trf.xlu0
        %v1480 = vpop.trf.xlu0
        %v1481 = vpop.trf.xlu0
        %v1482 = vpop.trf.xlu0
        %v1483 = vpop.trf.xlu0
        %v1484 = vpop.trf.xlu0
        %v1485 = vpop.trf.xlu0
        %v1486 = vpop.trf.xlu0
        %v1487 = vpop.trf.xlu0
        %v1488 = vpop.trf.xlu0
        %v1489 = vpop.trf.xlu0
        %v1490 = vpop.trf.xlu0
        %v1491 = vpop.trf.xlu0
        %v1492 = vpop.trf.xlu0
        %1493 = vxpose.xlu0.b32.start [1/16] %v1445, 128
        %1494 = vxpose.xlu0.b32.cont [2/16] %v1446, 128
        %1495 = vxpose.xlu0.b32.cont [3/16] %v1447, 128
        %1496 = vxpose.xlu0.b32.cont [4/16] %v1448, 128
        %1497 = vxpose.xlu0.b32.cont [5/16] %v1449, 128
        %1498 = vxpose.xlu0.b32.cont [6/16] %v1450, 128
        %1499 = vxpose.xlu0.b32.cont [7/16] %v1451, 128
        %1500 = vxpose.xlu0.b32.cont [8/16] %v1452, 128
        %1501 = vxpose.xlu0.b32.cont [9/16] %v1453, 128
        %1502 = vxpose.xlu0.b32.cont [10/16] %v1454, 128
        %1503 = vxpose.xlu0.b32.cont [11/16] %v1455, 128
        %1504 = vxpose.xlu0.b32.cont [12/16] %v1456, 128
        %1505 = vxpose.xlu0.b32.cont [13/16] %v1457, 128
        %1506 = vxpose.xlu0.b32.cont [14/16] %v1458, 128
        %1507 = vxpose.xlu0.b32.cont [15/16] %v1459, 128
        %1508 = vxpose.xlu0.b32.end [16/16] %v1460, 128
        %v1509 = vpop.trf.xlu0
        %v1510 = vpop.trf.xlu0
        %v1511 = vpop.trf.xlu0
        %v1512 = vpop.trf.xlu0
        %v1513 = vpop.trf.xlu0
        %v1514 = vpop.trf.xlu0
        %v1515 = vpop.trf.xlu0
        %v1516 = vpop.trf.xlu0
        %v1517 = vpop.trf.xlu0
        %v1518 = vpop.trf.xlu0
        %v1519 = vpop.trf.xlu0
        %v1520 = vpop.trf.xlu0
        %v1521 = vpop.trf.xlu0
        %v1522 = vpop.trf.xlu0
        %v1523 = vpop.trf.xlu0
        %v1524 = vpop.trf.xlu0
        %1525 = vxpose.xlu0.b32.start [1/16] %v322, 128
        %1526 = vxpose.xlu0.b32.cont [2/16] 0.0, 128
        %1527 = vxpose.xlu0.b32.cont [3/16] 0.0, 128
        %1528 = vxpose.xlu0.b32.cont [4/16] 0.0, 128
        %1529 = vxpose.xlu0.b32.cont [5/16] 0.0, 128
        %1530 = vxpose.xlu0.b32.cont [6/16] 0.0, 128
        %1531 = vxpose.xlu0.b32.cont [7/16] 0.0, 128
        %1532 = vxpose.xlu0.b32.cont [8/16] 0.0, 128
        %1533 = vxpose.xlu0.b32.cont [9/16] 0.0, 128
        %1534 = vxpose.xlu0.b32.cont [10/16] 0.0, 128
        %1535 = vxpose.xlu0.b32.cont [11/16] 0.0, 128
        %1536 = vxpose.xlu0.b32.cont [12/16] 0.0, 128
        %1537 = vxpose.xlu0.b32.cont [13/16] 0.0, 128
        %1538 = vxpose.xlu0.b32.cont [14/16] 0.0, 128
        %1539 = vxpose.xlu0.b32.cont [15/16] 0.0, 128
        %1540 = vxpose.xlu0.b32.end [16/16] 0.0, 128
        %v1541 = vpop.trf.xlu0
        %v1542 = vpop.trf.xlu0
        %v1543 = vpop.trf.xlu0
        %v1544 = vpop.trf.xlu0
        %v1545 = vpop.trf.xlu0
        %v1546 = vpop.trf.xlu0
        %v1547 = vpop.trf.xlu0
        %v1548 = vpop.trf.xlu0
        %v1549 = vpop.trf.xlu0
        %v1550 = vpop.trf.xlu0
        %v1551 = vpop.trf.xlu0
        %v1552 = vpop.trf.xlu0
        %v1553 = vpop.trf.xlu0
        %v1554 = vpop.trf.xlu0
        %v1555 = vpop.trf.xlu0
        %v1556 = vpop.trf.xlu0
        %1557 = vxpose.xlu0.b32.start [1/16] %v324, 128
        %1558 = vxpose.xlu0.b32.cont [2/16] 0.0, 128
        %1559 = vxpose.xlu0.b32.cont [3/16] 0.0, 128
        %1560 = vxpose.xlu0.b32.cont [4/16] 0.0, 128
        %1561 = vxpose.xlu0.b32.cont [5/16] 0.0, 128
        %1562 = vxpose.xlu0.b32.cont [6/16] 0.0, 128
        %1563 = vxpose.xlu0.b32.cont [7/16] 0.0, 128
        %1564 = vxpose.xlu0.b32.cont [8/16] 0.0, 128
        %1565 = vxpose.xlu0.b32.cont [9/16] 0.0, 128
        %1566 = vxpose.xlu0.b32.cont [10/16] 0.0, 128
        %1567 = vxpose.xlu0.b32.cont [11/16] 0.0, 128
        %1568 = vxpose.xlu0.b32.cont [12/16] 0.0, 128
        %1569 = vxpose.xlu0.b32.cont [13/16] 0.0, 128
        %1570 = vxpose.xlu0.b32.cont [14/16] 0.0, 128
        %1571 = vxpose.xlu0.b32.cont [15/16] 0.0, 128
        %1572 = vxpose.xlu0.b32.end [16/16] 0.0, 128
        %v1573 = vpop.trf.xlu0
        %v1574 = vpop.trf.xlu0
        %v1575 = vpop.trf.xlu0
        %v1576 = vpop.trf.xlu0
        %v1577 = vpop.trf.xlu0
        %v1578 = vpop.trf.xlu0
        %v1579 = vpop.trf.xlu0
        %v1580 = vpop.trf.xlu0
        %v1581 = vpop.trf.xlu0
        %v1582 = vpop.trf.xlu0
        %v1583 = vpop.trf.xlu0
        %v1584 = vpop.trf.xlu0
        %v1585 = vpop.trf.xlu0
        %v1586 = vpop.trf.xlu0
        %v1587 = vpop.trf.xlu0
        %v1588 = vpop.trf.xlu0
        %v1590 = vsel %vm402, %v1541, 0
        %v1593 = vsel %vm402, %v1542, 0
        %v1596 = vsel %vm402, %v1543, 0
        %v1599 = vsel %vm402, %v1544, 0
        %v1602 = vsel %vm402, %v1545, 0
        %v1605 = vsel %vm402, %v1546, 0
        %v1608 = vsel %vm402, %v1547, 0
        %v1611 = vsel %vm402, %v1548, 0
        %v1614 = vsel %vm402, %v1549, 0
        %v1617 = vsel %vm402, %v1550, 0
        %v1620 = vsel %vm402, %v1551, 0
        %v1623 = vsel %vm402, %v1552, 0
        %v1626 = vsel %vm402, %v1553, 0
        %v1629 = vsel %vm402, %v1554, 0
        %v1632 = vsel %vm402, %v1555, 0
        %v1635 = vsel %vm402, %v1556, 0
        %v1638 = vsel %vm402, %v1573, 0
        %v1641 = vsel %vm402, %v1574, 0
        %v1644 = vsel %vm402, %v1575, 0
        %v1647 = vsel %vm402, %v1576, 0
        %v1650 = vsel %vm402, %v1577, 0
        %v1653 = vsel %vm402, %v1578, 0
        %v1656 = vsel %vm402, %v1579, 0
        %v1659 = vsel %vm402, %v1580, 0
        %v1662 = vsel %vm402, %v1581, 0
        %v1665 = vsel %vm402, %v1582, 0
        %v1668 = vsel %vm402, %v1583, 0
        %v1671 = vsel %vm402, %v1584, 0
        %v1674 = vsel %vm402, %v1585, 0
        %v1677 = vsel %vm402, %v1586, 0
        %v1680 = vsel %vm402, %v1587, 0
        %v1683 = vsel %vm402, %v1588, 0
        %1685 = vmatprep.subr.mxu0 %v247
        %1686 = vmatpush1.msra.mxu0 %v245
        %1687 = vmatprep.subr.mxu0 0.0
        %1688 = vmatpush1.msra.mxu0 0.0
        %1689 = vmatprep.subr.mxu0 0.0
        %1690 = vmatpush1.msra.mxu0 0.0
        %1691 = vmatprep.subr.mxu0 0.0
        %1692 = vmatpush1.msra.mxu0 0.0
        %1693 = vmatprep.subr.mxu0 0.0
        %1694 = vmatpush1.msra.mxu0 0.0
        %1695 = vmatprep.subr.mxu0 0.0
        %1696 = vmatpush1.msra.mxu0 0.0
        %1697 = vmatprep.subr.mxu0 0.0
        %1698 = vmatpush1.msra.mxu0 0.0
        %1699 = vmatprep.subr.mxu0 0.0
        %1700 = vmatpush1.msra.mxu0 0.0
        %1701 = vmatprep.subr.mxu0 0.0
        %1702 = vmatpush1.msra.mxu0 0.0
        %1703 = vmatprep.subr.mxu0 0.0
        %1704 = vmatpush1.msra.mxu0 0.0
        %1705 = vmatprep.subr.mxu0 0.0
        %1706 = vmatpush1.msra.mxu0 0.0
        %1707 = vmatprep.subr.mxu0 0.0
        %1708 = vmatpush1.msra.mxu0 0.0
        %1709 = vmatprep.subr.mxu0 0.0
        %1710 = vmatpush1.msra.mxu0 0.0
        %1711 = vmatprep.subr.mxu0 0.0
        %1712 = vmatpush1.msra.mxu0 0.0
        %1713 = vmatprep.subr.mxu0 0.0
        %1714 = vmatpush1.msra.mxu0 0.0
        %1715 = vmatprep.subr.mxu0 0.0
        %1716 = vmatpush1.msra.mxu0 0.0
        %1717 = vmatprep.subr.mxu0 0.0
        %1718 = vmatpush1.msra.mxu0 0.0
        %1719 = vmatprep.subr.mxu0 0.0
        %1720 = vmatpush1.msra.mxu0 0.0
        %1721 = vmatprep.subr.mxu0 0.0
        %1722 = vmatpush1.msra.mxu0 0.0
        %1723 = vmatprep.subr.mxu0 0.0
        %1724 = vmatpush1.msra.mxu0 0.0
        %1725 = vmatprep.subr.mxu0 0.0
        %1726 = vmatpush1.msra.mxu0 0.0
        %1727 = vmatprep.subr.mxu0 0.0
        %1728 = vmatpush1.msra.mxu0 0.0
        %1729 = vmatprep.subr.mxu0 0.0
        %1730 = vmatpush1.msra.mxu0 0.0
        %1731 = vmatprep.subr.mxu0 0.0
        %1732 = vmatpush1.msra.mxu0 0.0
        %1733 = vmatprep.subr.mxu0 0.0
        %1734 = vmatpush1.msra.mxu0 0.0
        %1735 = vmatprep.subr.mxu0 0.0
        %1736 = vmatpush1.msra.mxu0 0.0
        %1737 = vmatprep.subr.mxu0 0.0
        %1738 = vmatpush1.msra.mxu0 0.0
        %1739 = vmatprep.subr.mxu0 0.0
        %1740 = vmatpush1.msra.mxu0 0.0
        %1741 = vmatprep.subr.mxu0 0.0
        %1742 = vmatpush1.msra.mxu0 0.0
        %1743 = vmatprep.subr.mxu0 0.0
        %1744 = vmatpush1.msra.mxu0 0.0
        %1745 = vmatprep.subr.mxu0 0.0
        %1746 = vmatpush1.msra.mxu0 0.0
        %1747 = vmatprep.subr.mxu0 0.0
        %1748 = vmatpush1.msra.mxu0 0.0
        %1749 = vmatprep.mubr.f32.mxu0 0.0
        %1750 = vmatmul.mubr.f32.gmra.mrb[0].mxu0 %v1590
        %v1751 = vpop.f32.mrb[0].mxu0
        %v1752 = vadd.f32 0.0, %v1751
        %v1753 = vpop.f32.mrb[0].mxu0
        %v1754 = vadd.f32 0.0, %v1753
        %1755 = vmatprep.mubr.f32.mxu0 0.0
        %1756 = vmatmul.mubr.f32.gmra.mrb[0].mxu0 %v1593
        %v1757 = vpop.f32.mrb[0].mxu0
        %v1758 = vadd.f32 0.0, %v1757
        %v1759 = vpop.f32.mrb[0].mxu0
        %v1760 = vadd.f32 0.0, %v1759
        %1761 = vmatprep.mubr.f32.mxu0 0.0
        %1762 = vmatmul.mubr.f32.gmra.mrb[0].mxu0 %v1596
        %v1763 = vpop.f32.mrb[0].mxu0
        %v1764 = vadd.f32 0.0, %v1763
        %v1765 = vpop.f32.mrb[0].mxu0
        %v1766 = vadd.f32 0.0, %v1765
        %1767 = vmatprep.mubr.f32.mxu0 0.0
        %1768 = vmatmul.mubr.f32.gmra.mrb[0].mxu0 %v1599
        %v1769 = vpop.f32.mrb[0].mxu0
        %v1770 = vadd.f32 0.0, %v1769
        %v1771 = vpop.f32.mrb[0].mxu0
        %v1772 = vadd.f32 0.0, %v1771
        %1773 = vmatprep.mubr.f32.mxu0 0.0
        %1774 = vmatmul.mubr.f32.gmra.mrb[0].mxu0 %v1602
        %v1775 = vpop.f32.mrb[0].mxu0
        %v1776 = vadd.f32 0.0, %v1775
        %v1777 = vpop.f32.mrb[0].mxu0
        %v1778 = vadd.f32 0.0, %v1777
        %1779 = vmatprep.mubr.f32.mxu0 0.0
        %1780 = vmatmul.mubr.f32.gmra.mrb[0].mxu0 %v1605
        %v1781 = vpop.f32.mrb[0].mxu0
        %v1782 = vadd.f32 0.0, %v1781
        %v1783 = vpop.f32.mrb[0].mxu0
        %v1784 = vadd.f32 0.0, %v1783
        %1785 = vmatprep.mubr.f32.mxu0 0.0
        %1786 = vmatmul.mubr.f32.gmra.mrb[0].mxu0 %v1608
        %v1787 = vpop.f32.mrb[0].mxu0
        %v1788 = vadd.f32 0.0, %v1787
        %v1789 = vpop.f32.mrb[0].mxu0
        %v1790 = vadd.f32 0.0, %v1789
        %1791 = vmatprep.mubr.f32.mxu0 0.0
        %1792 = vmatmul.mubr.f32.gmra.mrb[0].mxu0 %v1611
        %v1793 = vpop.f32.mrb[0].mxu0
        %v1794 = vadd.f32 0.0, %v1793
        %v1795 = vpop.f32.mrb[0].mxu0
        %v1796 = vadd.f32 0.0, %v1795
        %1797 = vmatprep.mubr.f32.mxu0 0.0
        %1798 = vmatmul.mubr.f32.gmra.mrb[0].mxu0 %v1614
        %v1799 = vpop.f32.mrb[0].mxu0
        %v1800 = vadd.f32 0.0, %v1799
        %v1801 = vpop.f32.mrb[0].mxu0
        %v1802 = vadd.f32 0.0, %v1801
        %1803 = vmatprep.mubr.f32.mxu0 0.0
        %1804 = vmatmul.mubr.f32.gmra.mrb[0].mxu0 %v1617
        %v1805 = vpop.f32.mrb[0].mxu0
        %v1806 = vadd.f32 0.0, %v1805
        %v1807 = vpop.f32.mrb[0].mxu0
        %v1808 = vadd.f32 0.0, %v1807
        %1809 = vmatprep.mubr.f32.mxu0 0.0
        %1810 = vmatmul.mubr.f32.gmra.mrb[0].mxu0 %v1620
        %v1811 = vpop.f32.mrb[0].mxu0
        %v1812 = vadd.f32 0.0, %v1811
        %v1813 = vpop.f32.mrb[0].mxu0
        %v1814 = vadd.f32 0.0, %v1813
        %1815 = vmatprep.mubr.f32.mxu0 0.0
        %1816 = vmatmul.mubr.f32.gmra.mrb[0].mxu0 %v1623
        %v1817 = vpop.f32.mrb[0].mxu0
        %v1818 = vadd.f32 0.0, %v1817
        %v1819 = vpop.f32.mrb[0].mxu0
        %v1820 = vadd.f32 0.0, %v1819
        %1821 = vmatprep.mubr.f32.mxu0 0.0
        %1822 = vmatmul.mubr.f32.gmra.mrb[0].mxu0 %v1626
        %v1823 = vpop.f32.mrb[0].mxu0
        %v1824 = vadd.f32 0.0, %v1823
        %v1825 = vpop.f32.mrb[0].mxu0
        %v1826 = vadd.f32 0.0, %v1825
        %1827 = vmatprep.mubr.f32.mxu0 0.0
        %1828 = vmatmul.mubr.f32.gmra.mrb[0].mxu0 %v1629
        %v1829 = vpop.f32.mrb[0].mxu0
        %v1830 = vadd.f32 0.0, %v1829
        %v1831 = vpop.f32.mrb[0].mxu0
        %v1832 = vadd.f32 0.0, %v1831
        %1833 = vmatprep.mubr.f32.mxu0 0.0
        %1834 = vmatmul.mubr.f32.gmra.mrb[0].mxu0 %v1632
        %v1835 = vpop.f32.mrb[0].mxu0
        %v1836 = vadd.f32 0.0, %v1835
        %v1837 = vpop.f32.mrb[0].mxu0
        %v1838 = vadd.f32 0.0, %v1837
        %1839 = vmatprep.mubr.f32.mxu0 0.0
        %1840 = vmatmul.mubr.f32.gmra.mrb[0].mxu0 %v1635
        %v1841 = vpop.f32.mrb[0].mxu0
        %v1842 = vadd.f32 0.0, %v1841
        %v1843 = vpop.f32.mrb[0].mxu0
        %v1844 = vadd.f32 0.0, %v1843
        %1845 = vmatprep.mubr.f32.mxu0 0.0
        %1846 = vmatmul.mubr.f32.gmra.mrb[0].mxu0 %v1638
        %v1847 = vpop.f32.mrb[0].mxu0
        %v1848 = vadd.f32 0.0, %v1847
        %v1849 = vpop.f32.mrb[0].mxu0
        %v1850 = vadd.f32 0.0, %v1849
        %1851 = vmatprep.mubr.f32.mxu0 0.0
        %1852 = vmatmul.mubr.f32.gmra.mrb[0].mxu0 %v1641
        %v1853 = vpop.f32.mrb[0].mxu0
        %v1854 = vadd.f32 0.0, %v1853
        %v1855 = vpop.f32.mrb[0].mxu0
        %v1856 = vadd.f32 0.0, %v1855
        %1857 = vmatprep.mubr.f32.mxu0 0.0
        %1858 = vmatmul.mubr.f32.gmra.mrb[0].mxu0 %v1644
        %v1859 = vpop.f32.mrb[0].mxu0
        %v1860 = vadd.f32 0.0, %v1859
        %v1861 = vpop.f32.mrb[0].mxu0
        %v1862 = vadd.f32 0.0, %v1861
        %1863 = vmatprep.mubr.f32.mxu0 0.0
        %1864 = vmatmul.mubr.f32.gmra.mrb[0].mxu0 %v1647
        %v1865 = vpop.f32.mrb[0].mxu0
        %v1866 = vadd.f32 0.0, %v1865
        %v1867 = vpop.f32.mrb[0].mxu0
        %v1868 = vadd.f32 0.0, %v1867
        %1869 = vmatprep.mubr.f32.mxu0 0.0
        %1870 = vmatmul.mubr.f32.gmra.mrb[0].mxu0 %v1650
        %v1871 = vpop.f32.mrb[0].mxu0
        %v1872 = vadd.f32 0.0, %v1871
        %v1873 = vpop.f32.mrb[0].mxu0
        %v1874 = vadd.f32 0.0, %v1873
        %1875 = vmatprep.mubr.f32.mxu0 0.0
        %1876 = vmatmul.mubr.f32.gmra.mrb[0].mxu0 %v1653
        %v1877 = vpop.f32.mrb[0].mxu0
        %v1878 = vadd.f32 0.0, %v1877
        %v1879 = vpop.f32.mrb[0].mxu0
        %v1880 = vadd.f32 0.0, %v1879
        %1881 = vmatprep.mubr.f32.mxu0 0.0
        %1882 = vmatmul.mubr.f32.gmra.mrb[0].mxu0 %v1656
        %v1883 = vpop.f32.mrb[0].mxu0
        %v1884 = vadd.f32 0.0, %v1883
        %v1885 = vpop.f32.mrb[0].mxu0
        %v1886 = vadd.f32 0.0, %v1885
        %1887 = vmatprep.mubr.f32.mxu0 0.0
        %1888 = vmatmul.mubr.f32.gmra.mrb[0].mxu0 %v1659
        %v1889 = vpop.f32.mrb[0].mxu0
        %v1890 = vadd.f32 0.0, %v1889
        %v1891 = vpop.f32.mrb[0].mxu0
        %v1892 = vadd.f32 0.0, %v1891
        %1893 = vmatprep.mubr.f32.mxu0 0.0
        %1894 = vmatmul.mubr.f32.gmra.mrb[0].mxu0 %v1662
        %v1895 = vpop.f32.mrb[0].mxu0
        %v1896 = vadd.f32 0.0, %v1895
        %v1897 = vpop.f32.mrb[0].mxu0
        %v1898 = vadd.f32 0.0, %v1897
        %1899 = vmatprep.mubr.f32.mxu0 0.0
        %1900 = vmatmul.mubr.f32.gmra.mrb[0].mxu0 %v1665
        %v1901 = vpop.f32.mrb[0].mxu0
        %v1902 = vadd.f32 0.0, %v1901
        %v1903 = vpop.f32.mrb[0].mxu0
        %v1904 = vadd.f32 0.0, %v1903
        %1905 = vmatprep.mubr.f32.mxu0 0.0
        %1906 = vmatmul.mubr.f32.gmra.mrb[0].mxu0 %v1668
        %v1907 = vpop.f32.mrb[0].mxu0
        %v1908 = vadd.f32 0.0, %v1907
        %v1909 = vpop.f32.mrb[0].mxu0
        %v1910 = vadd.f32 0.0, %v1909
        %1911 = vmatprep.mubr.f32.mxu0 0.0
        %1912 = vmatmul.mubr.f32.gmra.mrb[0].mxu0 %v1671
        %v1913 = vpop.f32.mrb[0].mxu0
        %v1914 = vadd.f32 0.0, %v1913
        %v1915 = vpop.f32.mrb[0].mxu0
        %v1916 = vadd.f32 0.0, %v1915
        %1917 = vmatprep.mubr.f32.mxu0 0.0
        %1918 = vmatmul.mubr.f32.gmra.mrb[0].mxu0 %v1674
        %v1919 = vpop.f32.mrb[0].mxu0
        %v1920 = vadd.f32 0.0, %v1919
        %v1921 = vpop.f32.mrb[0].mxu0
        %v1922 = vadd.f32 0.0, %v1921
        %1923 = vmatprep.mubr.f32.mxu0 0.0
        %1924 = vmatmul.mubr.f32.gmra.mrb[0].mxu0 %v1677
        %v1925 = vpop.f32.mrb[0].mxu0
        %v1926 = vadd.f32 0.0, %v1925
        %v1927 = vpop.f32.mrb[0].mxu0
        %v1928 = vadd.f32 0.0, %v1927
        %1929 = vmatprep.mubr.f32.mxu0 0.0
        %1930 = vmatmul.mubr.f32.gmra.mrb[0].mxu0 %v1680
        %v1931 = vpop.f32.mrb[0].mxu0
        %v1932 = vadd.f32 0.0, %v1931
        %v1933 = vpop.f32.mrb[0].mxu0
        %v1934 = vadd.f32 0.0, %v1933
        %1935 = vmatprep.mubr.f32.mxu0 0.0
        %1936 = vmatmul.mubr.f32.gmra.mrb[0].mxu0 %v1683
        %v1937 = vpop.f32.mrb[0].mxu0
        %v1938 = vadd.f32 0.0, %v1937
        %v1939 = vpop.f32.mrb[0].mxu0
        %v1940 = vadd.f32 0.0, %v1939
        %1941 = vdwg.mxu0
        %v1942 = vmax.f32 %v1752, %v1754
        %1943 = vmax.xlane.f32.xlu0 %v1942
        %v1944 = vpop.xlane.xlu0 %1943
        %v1945 = vmax.f32 %v1758, %v1760
        %1946 = vmax.xlane.f32.xlu0 %v1945
        %v1947 = vpop.xlane.xlu0 %1946
        %v1948 = vmax.f32 %v1764, %v1766
        %1949 = vmax.xlane.f32.xlu0 %v1948
        %v1950 = vpop.xlane.xlu0 %1949
        %v1951 = vmax.f32 %v1770, %v1772
        %1952 = vmax.xlane.f32.xlu0 %v1951
        %v1953 = vpop.xlane.xlu0 %1952
        %v1954 = vmax.f32 %v1776, %v1778
        %1955 = vmax.xlane.f32.xlu0 %v1954
        %v1956 = vpop.xlane.xlu0 %1955
        %v1957 = vmax.f32 %v1782, %v1784
        %1958 = vmax.xlane.f32.xlu0 %v1957
        %v1959 = vpop.xlane.xlu0 %1958
        %v1960 = vmax.f32 %v1788, %v1790
        %1961 = vmax.xlane.f32.xlu0 %v1960
        %v1962 = vpop.xlane.xlu0 %1961
        %v1963 = vmax.f32 %v1794, %v1796
        %1964 = vmax.xlane.f32.xlu0 %v1963
        %v1965 = vpop.xlane.xlu0 %1964
        %v1966 = vmax.f32 %v1800, %v1802
        %1967 = vmax.xlane.f32.xlu0 %v1966
        %v1968 = vpop.xlane.xlu0 %1967
        %v1969 = vmax.f32 %v1806, %v1808
        %1970 = vmax.xlane.f32.xlu0 %v1969
        %v1971 = vpop.xlane.xlu0 %1970
        %v1972 = vmax.f32 %v1812, %v1814
        %1973 = vmax.xlane.f32.xlu0 %v1972
        %v1974 = vpop.xlane.xlu0 %1973
        %v1975 = vmax.f32 %v1818, %v1820
        %1976 = vmax.xlane.f32.xlu0 %v1975
        %v1977 = vpop.xlane.xlu0 %1976
        %v1978 = vmax.f32 %v1824, %v1826
        %1979 = vmax.xlane.f32.xlu0 %v1978
        %v1980 = vpop.xlane.xlu0 %1979
        %v1981 = vmax.f32 %v1830, %v1832
        %1982 = vmax.xlane.f32.xlu0 %v1981
        %v1983 = vpop.xlane.xlu0 %1982
        %v1984 = vmax.f32 %v1836, %v1838
        %1985 = vmax.xlane.f32.xlu0 %v1984
        %v1986 = vpop.xlane.xlu0 %1985
        %v1987 = vmax.f32 %v1842, %v1844
        %1988 = vmax.xlane.f32.xlu0 %v1987
        %v1989 = vpop.xlane.xlu0 %1988
        %v1990 = vmax.f32 %v1848, %v1850
        %1991 = vmax.xlane.f32.xlu0 %v1990
        %v1992 = vpop.xlane.xlu0 %1991
        %v1993 = vmax.f32 %v1854, %v1856
        %1994 = vmax.xlane.f32.xlu0 %v1993
        %v1995 = vpop.xlane.xlu0 %1994
        %v1996 = vmax.f32 %v1860, %v1862
        %1997 = vmax.xlane.f32.xlu0 %v1996
        %v1998 = vpop.xlane.xlu0 %1997
        %v1999 = vmax.f32 %v1866, %v1868
        %2000 = vmax.xlane.f32.xlu0 %v1999
        %v2001 = vpop.xlane.xlu0 %2000
        %v2002 = vmax.f32 %v1872, %v1874
        %2003 = vmax.xlane.f32.xlu0 %v2002
        %v2004 = vpop.xlane.xlu0 %2003
        %v2005 = vmax.f32 %v1878, %v1880
        %2006 = vmax.xlane.f32.xlu0 %v2005
        %v2007 = vpop.xlane.xlu0 %2006
        %v2008 = vmax.f32 %v1884, %v1886
        %2009 = vmax.xlane.f32.xlu0 %v2008
        %v2010 = vpop.xlane.xlu0 %2009
        %v2011 = vmax.f32 %v1890, %v1892
        %2012 = vmax.xlane.f32.xlu0 %v2011
        %v2013 = vpop.xlane.xlu0 %2012
        %v2014 = vmax.f32 %v1896, %v1898
        %2015 = vmax.xlane.f32.xlu0 %v2014
        %v2016 = vpop.xlane.xlu0 %2015
        %v2017 = vmax.f32 %v1902, %v1904
        %2018 = vmax.xlane.f32.xlu0 %v2017
        %v2019 = vpop.xlane.xlu0 %2018
        %v2020 = vmax.f32 %v1908, %v1910
        %2021 = vmax.xlane.f32.xlu0 %v2020
        %v2022 = vpop.xlane.xlu0 %2021
        %v2023 = vmax.f32 %v1914, %v1916
        %2024 = vmax.xlane.f32.xlu0 %v2023
        %v2025 = vpop.xlane.xlu0 %2024
        %v2026 = vmax.f32 %v1920, %v1922
        %2027 = vmax.xlane.f32.xlu0 %v2026
        %v2028 = vpop.xlane.xlu0 %2027
        %v2029 = vmax.f32 %v1926, %v1928
        %2030 = vmax.xlane.f32.xlu0 %v2029
        %v2031 = vpop.xlane.xlu0 %2030
        %v2032 = vmax.f32 %v1932, %v1934
        %2033 = vmax.xlane.f32.xlu0 %v2032
        %v2034 = vpop.xlane.xlu0 %2033
        %v2035 = vmax.f32 %v1938, %v1940
        %2036 = vmax.xlane.f32.xlu0 %v2035
        %v2037 = vpop.xlane.xlu0 %2036
        %v2038 = vsub.f32 %v1752, %v1944
        %v2039 = vsub.f32 %v1754, %v1944
        %v2040 = vsub.f32 %v1758, %v1947
        %v2041 = vsub.f32 %v1760, %v1947
        %v2042 = vsub.f32 %v1764, %v1950
        %v2043 = vsub.f32 %v1766, %v1950
        %v2044 = vsub.f32 %v1770, %v1953
        %v2045 = vsub.f32 %v1772, %v1953
        %v2046 = vsub.f32 %v1776, %v1956
        %v2047 = vsub.f32 %v1778, %v1956
        %v2048 = vsub.f32 %v1782, %v1959
        %v2049 = vsub.f32 %v1784, %v1959
        %v2050 = vsub.f32 %v1788, %v1962
        %v2051 = vsub.f32 %v1790, %v1962
        %v2052 = vsub.f32 %v1794, %v1965
        %v2053 = vsub.f32 %v1796, %v1965
        %v2054 = vsub.f32 %v1800, %v1968
        %v2055 = vsub.f32 %v1802, %v1968
        %v2056 = vsub.f32 %v1806, %v1971
        %v2057 = vsub.f32 %v1808, %v1971
        %v2058 = vsub.f32 %v1812, %v1974
        %v2059 = vsub.f32 %v1814, %v1974
        %v2060 = vsub.f32 %v1818, %v1977
        %v2061 = vsub.f32 %v1820, %v1977
        %v2062 = vsub.f32 %v1824, %v1980
        %v2063 = vsub.f32 %v1826, %v1980
        %v2064 = vsub.f32 %v1830, %v1983
        %v2065 = vsub.f32 %v1832, %v1983
        %v2066 = vsub.f32 %v1836, %v1986
        %v2067 = vsub.f32 %v1838, %v1986
        %v2068 = vsub.f32 %v1842, %v1989
        %v2069 = vsub.f32 %v1844, %v1989
        %v2070 = vsub.f32 %v1848, %v1992
        %v2071 = vsub.f32 %v1850, %v1992
        %v2072 = vsub.f32 %v1854, %v1995
        %v2073 = vsub.f32 %v1856, %v1995
        %v2074 = vsub.f32 %v1860, %v1998
        %v2075 = vsub.f32 %v1862, %v1998
        %v2076 = vsub.f32 %v1866, %v2001
        %v2077 = vsub.f32 %v1868, %v2001
        %v2078 = vsub.f32 %v1872, %v2004
        %v2079 = vsub.f32 %v1874, %v2004
        %v2080 = vsub.f32 %v1878, %v2007
        %v2081 = vsub.f32 %v1880, %v2007
        %v2082 = vsub.f32 %v1884, %v2010
        %v2083 = vsub.f32 %v1886, %v2010
        %v2084 = vsub.f32 %v1890, %v2013
        %v2085 = vsub.f32 %v1892, %v2013
        %v2086 = vsub.f32 %v1896, %v2016
        %v2087 = vsub.f32 %v1898, %v2016
        %v2088 = vsub.f32 %v1902, %v2019
        %v2089 = vsub.f32 %v1904, %v2019
        %v2090 = vsub.f32 %v1908, %v2022
        %v2091 = vsub.f32 %v1910, %v2022
        %v2092 = vsub.f32 %v1914, %v2025
        %v2093 = vsub.f32 %v1916, %v2025
        %v2094 = vsub.f32 %v1920, %v2028
        %v2095 = vsub.f32 %v1922, %v2028
        %v2096 = vsub.f32 %v1926, %v2031
        %v2097 = vsub.f32 %v1928, %v2031
        %v2098 = vsub.f32 %v1932, %v2034
        %v2099 = vsub.f32 %v1934, %v2034
        %v2100 = vsub.f32 %v1938, %v2037
        %v2101 = vsub.f32 %v1940, %v2037
        %v2102 = vmul.f32 %v2038, 1.442695
        %v2103 = vpow.pop %v2102
        %v2104 = vmul.f32 %v2039, 1.442695
        %v2105 = vpow.pop %v2104
        %v2106 = vmul.f32 %v2040, 1.442695
        %v2107 = vpow.pop %v2106
        %v2108 = vmul.f32 %v2041, 1.442695
        %v2109 = vpow.pop %v2108
        %v2110 = vmul.f32 %v2042, 1.442695
        %v2111 = vpow.pop %v2110
        %v2112 = vmul.f32 %v2043, 1.442695
        %v2113 = vpow.pop %v2112
        %v2114 = vmul.f32 %v2044, 1.442695
        %v2115 = vpow.pop %v2114
        %v2116 = vmul.f32 %v2045, 1.442695
        %v2117 = vpow.pop %v2116
        %v2118 = vmul.f32 %v2046, 1.442695
        %v2119 = vpow.pop %v2118
        %v2120 = vmul.f32 %v2047, 1.442695
        %v2121 = vpow.pop %v2120
        %v2122 = vmul.f32 %v2048, 1.442695
        %v2123 = vpow.pop %v2122
        %v2124 = vmul.f32 %v2049, 1.442695
        %v2125 = vpow.pop %v2124
        %v2126 = vmul.f32 %v2050, 1.442695
        %v2127 = vpow.pop %v2126
        %v2128 = vmul.f32 %v2051, 1.442695
        %v2129 = vpow.pop %v2128
        %v2130 = vmul.f32 %v2052, 1.442695
        %v2131 = vpow.pop %v2130
        %v2132 = vmul.f32 %v2053, 1.442695
        %v2133 = vpow.pop %v2132
        %v2134 = vmul.f32 %v2054, 1.442695
        %v2135 = vpow.pop %v2134
        %v2136 = vmul.f32 %v2055, 1.442695
        %v2137 = vpow.pop %v2136
        %v2138 = vmul.f32 %v2056, 1.442695
        %v2139 = vpow.pop %v2138
        %v2140 = vmul.f32 %v2057, 1.442695
        %v2141 = vpow.pop %v2140
        %v2142 = vmul.f32 %v2058, 1.442695
        %v2143 = vpow.pop %v2142
        %v2144 = vmul.f32 %v2059, 1.442695
        %v2145 = vpow.pop %v2144
        %v2146 = vmul.f32 %v2060, 1.442695
        %v2147 = vpow.pop %v2146
        %v2148 = vmul.f32 %v2061, 1.442695
        %v2149 = vpow.pop %v2148
        %v2150 = vmul.f32 %v2062, 1.442695
        %v2151 = vpow.pop %v2150
        %v2152 = vmul.f32 %v2063, 1.442695
        %v2153 = vpow.pop %v2152
        %v2154 = vmul.f32 %v2064, 1.442695
        %v2155 = vpow.pop %v2154
        %v2156 = vmul.f32 %v2065, 1.442695
        %v2157 = vpow.pop %v2156
        %v2158 = vmul.f32 %v2066, 1.442695
        %v2159 = vpow.pop %v2158
        %v2160 = vmul.f32 %v2067, 1.442695
        %v2161 = vpow.pop %v2160
        %v2162 = vmul.f32 %v2068, 1.442695
        %v2163 = vpow.pop %v2162
        %v2164 = vmul.f32 %v2069, 1.442695
        %v2165 = vpow.pop %v2164
        %v2166 = vmul.f32 %v2070, 1.442695
        %v2167 = vpow.pop %v2166
        %v2168 = vmul.f32 %v2071, 1.442695
        %v2169 = vpow.pop %v2168
        %v2170 = vmul.f32 %v2072, 1.442695
        %v2171 = vpow.pop %v2170
        %v2172 = vmul.f32 %v2073, 1.442695
        %v2173 = vpow.pop %v2172
        %v2174 = vmul.f32 %v2074, 1.442695
        %v2175 = vpow.pop %v2174
        %v2176 = vmul.f32 %v2075, 1.442695
        %v2177 = vpow.pop %v2176
        %v2178 = vmul.f32 %v2076, 1.442695
        %v2179 = vpow.pop %v2178
        %v2180 = vmul.f32 %v2077, 1.442695
        %v2181 = vpow.pop %v2180
        %v2182 = vmul.f32 %v2078, 1.442695
        %v2183 = vpow.pop %v2182
        %v2184 = vmul.f32 %v2079, 1.442695
        %v2185 = vpow.pop %v2184
        %v2186 = vmul.f32 %v2080, 1.442695
        %v2187 = vpow.pop %v2186
        %v2188 = vmul.f32 %v2081, 1.442695
        %v2189 = vpow.pop %v2188
        %v2190 = vmul.f32 %v2082, 1.442695
        %v2191 = vpow.pop %v2190
        %v2192 = vmul.f32 %v2083, 1.442695
        %v2193 = vpow.pop %v2192
        %v2194 = vmul.f32 %v2084, 1.442695
        %v2195 = vpow.pop %v2194
        %v2196 = vmul.f32 %v2085, 1.442695
        %v2197 = vpow.pop %v2196
        %v2198 = vmul.f32 %v2086, 1.442695
        %v2199 = vpow.pop %v2198
        %v2200 = vmul.f32 %v2087, 1.442695
        %v2201 = vpow.pop %v2200
        %v2202 = vmul.f32 %v2088, 1.442695
        %v2203 = vpow.pop %v2202
        %v2204 = vmul.f32 %v2089, 1.442695
        %v2205 = vpow.pop %v2204
        %v2206 = vmul.f32 %v2090, 1.442695
        %v2207 = vpow.pop %v2206
        %v2208 = vmul.f32 %v2091, 1.442695
        %v2209 = vpow.pop %v2208
        %v2210 = vmul.f32 %v2092, 1.442695
        %v2211 = vpow.pop %v2210
        %v2212 = vmul.f32 %v2093, 1.442695
        %v2213 = vpow.pop %v2212
        %v2214 = vmul.f32 %v2094, 1.442695
        %v2215 = vpow.pop %v2214
        %v2216 = vmul.f32 %v2095, 1.442695
        %v2217 = vpow.pop %v2216
        %v2218 = vmul.f32 %v2096, 1.442695
        %v2219 = vpow.pop %v2218
        %v2220 = vmul.f32 %v2097, 1.442695
        %v2221 = vpow.pop %v2220
        %v2222 = vmul.f32 %v2098, 1.442695
        %v2223 = vpow.pop %v2222
        %v2224 = vmul.f32 %v2099, 1.442695
        %v2225 = vpow.pop %v2224
        %v2226 = vmul.f32 %v2100, 1.442695
        %v2227 = vpow.pop %v2226
        %v2228 = vmul.f32 %v2101, 1.442695
        %v2229 = vpow.pop %v2228
        %v2230 = vadd.f32 %v2103, %v2105
        %2231 = vadd.xlane.f32.xlu0 %v2230
        %v2232 = vpop.xlane.xlu0 %2231
        %v2233 = vadd.f32 %v2107, %v2109
        %2234 = vadd.xlane.f32.xlu0 %v2233
        %v2235 = vpop.xlane.xlu0 %2234
        %v2236 = vadd.f32 %v2111, %v2113
        %2237 = vadd.xlane.f32.xlu0 %v2236
        %v2238 = vpop.xlane.xlu0 %2237
        %v2239 = vadd.f32 %v2115, %v2117
        %2240 = vadd.xlane.f32.xlu0 %v2239
        %v2241 = vpop.xlane.xlu0 %2240
        %v2242 = vadd.f32 %v2119, %v2121
        %2243 = vadd.xlane.f32.xlu0 %v2242
        %v2244 = vpop.xlane.xlu0 %2243
        %v2245 = vadd.f32 %v2123, %v2125
        %2246 = vadd.xlane.f32.xlu0 %v2245
        %v2247 = vpop.xlane.xlu0 %2246
        %v2248 = vadd.f32 %v2127, %v2129
        %2249 = vadd.xlane.f32.xlu0 %v2248
        %v2250 = vpop.xlane.xlu0 %2249
        %v2251 = vadd.f32 %v2131, %v2133
        %2252 = vadd.xlane.f32.xlu0 %v2251
        %v2253 = vpop.xlane.xlu0 %2252
        %v2254 = vadd.f32 %v2135, %v2137
        %2255 = vadd.xlane.f32.xlu0 %v2254
        %v2256 = vpop.xlane.xlu0 %2255
        %v2257 = vadd.f32 %v2139, %v2141
        %2258 = vadd.xlane.f32.xlu0 %v2257
        %v2259 = vpop.xlane.xlu0 %2258
        %v2260 = vadd.f32 %v2143, %v2145
        %2261 = vadd.xlane.f32.xlu0 %v2260
        %v2262 = vpop.xlane.xlu0 %2261
        %v2263 = vadd.f32 %v2147, %v2149
        %2264 = vadd.xlane.f32.xlu0 %v2263
        %v2265 = vpop.xlane.xlu0 %2264
        %v2266 = vadd.f32 %v2151, %v2153
        %2267 = vadd.xlane.f32.xlu0 %v2266
        %v2268 = vpop.xlane.xlu0 %2267
        %v2269 = vadd.f32 %v2155, %v2157
        %2270 = vadd.xlane.f32.xlu0 %v2269
        %v2271 = vpop.xlane.xlu0 %2270
        %v2272 = vadd.f32 %v2159, %v2161
        %2273 = vadd.xlane.f32.xlu0 %v2272
        %v2274 = vpop.xlane.xlu0 %2273
        %v2275 = vadd.f32 %v2163, %v2165
        %2276 = vadd.xlane.f32.xlu0 %v2275
        %v2277 = vpop.xlane.xlu0 %2276
        %v2278 = vadd.f32 %v2167, %v2169
        %2279 = vadd.xlane.f32.xlu0 %v2278
        %v2280 = vpop.xlane.xlu0 %2279
        %v2281 = vadd.f32 %v2171, %v2173
        %2282 = vadd.xlane.f32.xlu0 %v2281
        %v2283 = vpop.xlane.xlu0 %2282
        %v2284 = vadd.f32 %v2175, %v2177
        %2285 = vadd.xlane.f32.xlu0 %v2284
        %v2286 = vpop.xlane.xlu0 %2285
        %v2287 = vadd.f32 %v2179, %v2181
        %2288 = vadd.xlane.f32.xlu0 %v2287
        %v2289 = vpop.xlane.xlu0 %2288
        %v2290 = vadd.f32 %v2183, %v2185
        %2291 = vadd.xlane.f32.xlu0 %v2290
        %v2292 = vpop.xlane.xlu0 %2291
        %v2293 = vadd.f32 %v2187, %v2189
        %2294 = vadd.xlane.f32.xlu0 %v2293
        %v2295 = vpop.xlane.xlu0 %2294
        %v2296 = vadd.f32 %v2191, %v2193
        %2297 = vadd.xlane.f32.xlu0 %v2296
        %v2298 = vpop.xlane.xlu0 %2297
        %v2299 = vadd.f32 %v2195, %v2197
        %2300 = vadd.xlane.f32.xlu0 %v2299
        %v2301 = vpop.xlane.xlu0 %2300
        %v2302 = vadd.f32 %v2199, %v2201
        %2303 = vadd.xlane.f32.xlu0 %v2302
        %v2304 = vpop.xlane.xlu0 %2303
        %v2305 = vadd.f32 %v2203, %v2205
        %2306 = vadd.xlane.f32.xlu0 %v2305
        %v2307 = vpop.xlane.xlu0 %2306
        %v2308 = vadd.f32 %v2207, %v2209
        %2309 = vadd.xlane.f32.xlu0 %v2308
        %v2310 = vpop.xlane.xlu0 %2309
        %v2311 = vadd.f32 %v2211, %v2213
        %2312 = vadd.xlane.f32.xlu0 %v2311
        %v2313 = vpop.xlane.xlu0 %2312
        %v2314 = vadd.f32 %v2215, %v2217
        %2315 = vadd.xlane.f32.xlu0 %v2314
        %v2316 = vpop.xlane.xlu0 %2315
        %v2317 = vadd.f32 %v2219, %v2221
        %2318 = vadd.xlane.f32.xlu0 %v2317
        %v2319 = vpop.xlane.xlu0 %2318
        %v2320 = vadd.f32 %v2223, %v2225
        %2321 = vadd.xlane.f32.xlu0 %v2320
        %v2322 = vpop.xlane.xlu0 %2321
        %v2323 = vadd.f32 %v2227, %v2229
        %2324 = vadd.xlane.f32.xlu0 %v2323
        %v2325 = vpop.xlane.xlu0 %2324
        %2326 = vmatprep.subr.mxu0 %v336
        %2327 = vmatpush1.xpose.msra.mxu0 %v334
        %2328 = vmatprep.subr.mxu0 0.0
        %2329 = vmatpush1.xpose.msra.mxu0 0.0
        %2330 = vmatprep.subr.mxu0 0.0
        %2331 = vmatpush1.xpose.msra.mxu0 0.0
        %2332 = vmatprep.subr.mxu0 0.0
        %2333 = vmatpush1.xpose.msra.mxu0 0.0
        %2334 = vmatprep.subr.mxu0 0.0
        %2335 = vmatpush1.xpose.msra.mxu0 0.0
        %2336 = vmatprep.subr.mxu0 0.0
        %2337 = vmatpush1.xpose.msra.mxu0 0.0
        %2338 = vmatprep.subr.mxu0 0.0
        %2339 = vmatpush1.xpose.msra.mxu0 0.0
        %2340 = vmatprep.subr.mxu0 0.0
        %2341 = vmatpush1.xpose.msra.mxu0 0.0
        %2342 = vmatprep.subr.mxu0 0.0
        %2343 = vmatpush1.xpose.msra.mxu0 0.0
        %2344 = vmatprep.subr.mxu0 0.0
        %2345 = vmatpush1.xpose.msra.mxu0 0.0
        %2346 = vmatprep.subr.mxu0 0.0
        %2347 = vmatpush1.xpose.msra.mxu0 0.0
        %2348 = vmatprep.subr.mxu0 0.0
        %2349 = vmatpush1.xpose.msra.mxu0 0.0
        %2350 = vmatprep.subr.mxu0 0.0
        %2351 = vmatpush1.xpose.msra.mxu0 0.0
        %2352 = vmatprep.subr.mxu0 0.0
        %2353 = vmatpush1.xpose.msra.mxu0 0.0
        %2354 = vmatprep.subr.mxu0 0.0
        %2355 = vmatpush1.xpose.msra.mxu0 0.0
        %2356 = vmatprep.subr.mxu0 0.0
        %2357 = vmatpush1.xpose.msra.mxu0 0.0
        %2358 = vmatprep.subr.mxu0 0.0
        %2359 = vmatpush1.xpose.msra.mxu0 0.0
        %2360 = vmatprep.subr.mxu0 0.0
        %2361 = vmatpush1.xpose.msra.mxu0 0.0
        %2362 = vmatprep.subr.mxu0 0.0
        %2363 = vmatpush1.xpose.msra.mxu0 0.0
        %2364 = vmatprep.subr.mxu0 0.0
        %2365 = vmatpush1.xpose.msra.mxu0 0.0
        %2366 = vmatprep.subr.mxu0 0.0
        %2367 = vmatpush1.xpose.msra.mxu0 0.0
        %2368 = vmatprep.subr.mxu0 0.0
        %2369 = vmatpush1.xpose.msra.mxu0 0.0
        %2370 = vmatprep.subr.mxu0 0.0
        %2371 = vmatpush1.xpose.msra.mxu0 0.0
        %2372 = vmatprep.subr.mxu0 0.0
        %2373 = vmatpush1.xpose.msra.mxu0 0.0
        %2374 = vmatprep.subr.mxu0 0.0
        %2375 = vmatpush1.xpose.msra.mxu0 0.0
        %2376 = vmatprep.subr.mxu0 0.0
        %2377 = vmatpush1.xpose.msra.mxu0 0.0
        %2378 = vmatprep.subr.mxu0 0.0
        %2379 = vmatpush1.xpose.msra.mxu0 0.0
        %2380 = vmatprep.subr.mxu0 0.0
        %2381 = vmatpush1.xpose.msra.mxu0 0.0
        %2382 = vmatprep.subr.mxu0 0.0
        %2383 = vmatpush1.xpose.msra.mxu0 0.0
        %2384 = vmatprep.subr.mxu0 0.0
        %2385 = vmatpush1.xpose.msra.mxu0 0.0
        %2386 = vmatprep.subr.mxu0 0.0
        %2387 = vmatpush1.xpose.msra.mxu0 0.0
        %2388 = vmatprep.subr.mxu0 0.0
        %2389 = vmatpush1.xpose.msra.mxu0 0.0
        %2390 = vmatprep.mubr.f32.mxu0 %v2105
        %2391 = vmatmul.mubr.f32.gmra.mrb[0].mxu0 %v2103
        %v2392 = vpop.f32.mrb[0].mxu0
        %v2393 = vadd.f32 0.0, %v2392
        %v2394 = vpop.f32.mrb[0].mxu0
        %2395 = vmatprep.mubr.f32.mxu0 %v2109
        %2396 = vmatmul.mubr.f32.gmra.mrb[0].mxu0 %v2107
        %v2397 = vpop.f32.mrb[0].mxu0
        %v2398 = vadd.f32 0.0, %v2397
        %v2399 = vpop.f32.mrb[0].mxu0
        %2400 = vmatprep.mubr.f32.mxu0 %v2113
        %2401 = vmatmul.mubr.f32.gmra.mrb[0].mxu0 %v2111
        %v2402 = vpop.f32.mrb[0].mxu0
        %v2403 = vadd.f32 0.0, %v2402
        %v2404 = vpop.f32.mrb[0].mxu0
        %2405 = vmatprep.mubr.f32.mxu0 %v2117
        %2406 = vmatmul.mubr.f32.gmra.mrb[0].mxu0 %v2115
        %v2407 = vpop.f32.mrb[0].mxu0
        %v2408 = vadd.f32 0.0, %v2407
        %v2409 = vpop.f32.mrb[0].mxu0
        %2410 = vmatprep.mubr.f32.mxu0 %v2121
        %2411 = vmatmul.mubr.f32.gmra.mrb[0].mxu0 %v2119
        %v2412 = vpop.f32.mrb[0].mxu0
        %v2413 = vadd.f32 0.0, %v2412
        %v2414 = vpop.f32.mrb[0].mxu0
        %2415 = vmatprep.mubr.f32.mxu0 %v2125
        %2416 = vmatmul.mubr.f32.gmra.mrb[0].mxu0 %v2123
        %v2417 = vpop.f32.mrb[0].mxu0
        %v2418 = vadd.f32 0.0, %v2417
        %v2419 = vpop.f32.mrb[0].mxu0
        %2420 = vmatprep.mubr.f32.mxu0 %v2129
        %2421 = vmatmul.mubr.f32.gmra.mrb[0].mxu0 %v2127
        %v2422 = vpop.f32.mrb[0].mxu0
        %v2423 = vadd.f32 0.0, %v2422
        %v2424 = vpop.f32.mrb[0].mxu0
        %2425 = vmatprep.mubr.f32.mxu0 %v2133
        %2426 = vmatmul.mubr.f32.gmra.mrb[0].mxu0 %v2131
        %v2427 = vpop.f32.mrb[0].mxu0
        %v2428 = vadd.f32 0.0, %v2427
        %v2429 = vpop.f32.mrb[0].mxu0
        %2430 = vmatprep.mubr.f32.mxu0 %v2137
        %2431 = vmatmul.mubr.f32.gmra.mrb[0].mxu0 %v2135
        %v2432 = vpop.f32.mrb[0].mxu0
        %v2433 = vadd.f32 0.0, %v2432
        %v2434 = vpop.f32.mrb[0].mxu0
        %2435 = vmatprep.mubr.f32.mxu0 %v2141
        %2436 = vmatmul.mubr.f32.gmra.mrb[0].mxu0 %v2139
        %v2437 = vpop.f32.mrb[0].mxu0
        %v2438 = vadd.f32 0.0, %v2437
        %v2439 = vpop.f32.mrb[0].mxu0
        %2440 = vmatprep.mubr.f32.mxu0 %v2145
        %2441 = vmatmul.mubr.f32.gmra.mrb[0].mxu0 %v2143
        %v2442 = vpop.f32.mrb[0].mxu0
        %v2443 = vadd.f32 0.0, %v2442
        %v2444 = vpop.f32.mrb[0].mxu0
        %2445 = vmatprep.mubr.f32.mxu0 %v2149
        %2446 = vmatmul.mubr.f32.gmra.mrb[0].mxu0 %v2147
        %v2447 = vpop.f32.mrb[0].mxu0
        %v2448 = vadd.f32 0.0, %v2447
        %v2449 = vpop.f32.mrb[0].mxu0
        %2450 = vmatprep.mubr.f32.mxu0 %v2153
        %2451 = vmatmul.mubr.f32.gmra.mrb[0].mxu0 %v2151
        %v2452 = vpop.f32.mrb[0].mxu0
        %v2453 = vadd.f32 0.0, %v2452
        %v2454 = vpop.f32.mrb[0].mxu0
        %2455 = vmatprep.mubr.f32.mxu0 %v2157
        %2456 = vmatmul.mubr.f32.gmra.mrb[0].mxu0 %v2155
        %v2457 = vpop.f32.mrb[0].mxu0
        %v2458 = vadd.f32 0.0, %v2457
        %v2459 = vpop.f32.mrb[0].mxu0
        %2460 = vmatprep.mubr.f32.mxu0 %v2161
        %2461 = vmatmul.mubr.f32.gmra.mrb[0].mxu0 %v2159
        %v2462 = vpop.f32.mrb[0].mxu0
        %v2463 = vadd.f32 0.0, %v2462
        %v2464 = vpop.f32.mrb[0].mxu0
        %2465 = vmatprep.mubr.f32.mxu0 %v2165
        %2466 = vmatmul.mubr.f32.gmra.mrb[0].mxu0 %v2163
        %v2467 = vpop.f32.mrb[0].mxu0
        %v2468 = vadd.f32 0.0, %v2467
        %v2469 = vpop.f32.mrb[0].mxu0
        %2470 = vmatprep.mubr.f32.mxu0 %v2169
        %2471 = vmatmul.mubr.f32.gmra.mrb[0].mxu0 %v2167
        %v2472 = vpop.f32.mrb[0].mxu0
        %v2473 = vadd.f32 0.0, %v2472
        %v2474 = vpop.f32.mrb[0].mxu0
        %2475 = vmatprep.mubr.f32.mxu0 %v2173
        %2476 = vmatmul.mubr.f32.gmra.mrb[0].mxu0 %v2171
        %v2477 = vpop.f32.mrb[0].mxu0
        %v2478 = vadd.f32 0.0, %v2477
        %v2479 = vpop.f32.mrb[0].mxu0
        %2480 = vmatprep.mubr.f32.mxu0 %v2177
        %2481 = vmatmul.mubr.f32.gmra.mrb[0].mxu0 %v2175
        %v2482 = vpop.f32.mrb[0].mxu0
        %v2483 = vadd.f32 0.0, %v2482
        %v2484 = vpop.f32.mrb[0].mxu0
        %2485 = vmatprep.mubr.f32.mxu0 %v2181
        %2486 = vmatmul.mubr.f32.gmra.mrb[0].mxu0 %v2179
        %v2487 = vpop.f32.mrb[0].mxu0
        %v2488 = vadd.f32 0.0, %v2487
        %v2489 = vpop.f32.mrb[0].mxu0
        %2490 = vmatprep.mubr.f32.mxu0 %v2185
        %2491 = vmatmul.mubr.f32.gmra.mrb[0].mxu0 %v2183
        %v2492 = vpop.f32.mrb[0].mxu0
        %v2493 = vadd.f32 0.0, %v2492
        %v2494 = vpop.f32.mrb[0].mxu0
        %2495 = vmatprep.mubr.f32.mxu0 %v2189
        %2496 = vmatmul.mubr.f32.gmra.mrb[0].mxu0 %v2187
        %v2497 = vpop.f32.mrb[0].mxu0
        %v2498 = vadd.f32 0.0, %v2497
        %v2499 = vpop.f32.mrb[0].mxu0
        %2500 = vmatprep.mubr.f32.mxu0 %v2193
        %2501 = vmatmul.mubr.f32.gmra.mrb[0].mxu0 %v2191
        %v2502 = vpop.f32.mrb[0].mxu0
        %v2503 = vadd.f32 0.0, %v2502
        %v2504 = vpop.f32.mrb[0].mxu0
        %2505 = vmatprep.mubr.f32.mxu0 %v2197
        %2506 = vmatmul.mubr.f32.gmra.mrb[0].mxu0 %v2195
        %v2507 = vpop.f32.mrb[0].mxu0
        %v2508 = vadd.f32 0.0, %v2507
        %v2509 = vpop.f32.mrb[0].mxu0
        %2510 = vmatprep.mubr.f32.mxu0 %v2201
        %2511 = vmatmul.mubr.f32.gmra.mrb[0].mxu0 %v2199
        %v2512 = vpop.f32.mrb[0].mxu0
        %v2513 = vadd.f32 0.0, %v2512
        %v2514 = vpop.f32.mrb[0].mxu0
        %2515 = vmatprep.mubr.f32.mxu0 %v2205
        %2516 = vmatmul.mubr.f32.gmra.mrb[0].mxu0 %v2203
        %v2517 = vpop.f32.mrb[0].mxu0
        %v2518 = vadd.f32 0.0, %v2517
        %v2519 = vpop.f32.mrb[0].mxu0
        %2520 = vmatprep.mubr.f32.mxu0 %v2209
        %2521 = vmatmul.mubr.f32.gmra.mrb[0].mxu0 %v2207
        %v2522 = vpop.f32.mrb[0].mxu0
        %v2523 = vadd.f32 0.0, %v2522
        %v2524 = vpop.f32.mrb[0].mxu0
        %2525 = vmatprep.mubr.f32.mxu0 %v2213
        %2526 = vmatmul.mubr.f32.gmra.mrb[0].mxu0 %v2211
        %v2527 = vpop.f32.mrb[0].mxu0
        %v2528 = vadd.f32 0.0, %v2527
        %v2529 = vpop.f32.mrb[0].mxu0
        %2530 = vmatprep.mubr.f32.mxu0 %v2217
        %2531 = vmatmul.mubr.f32.gmra.mrb[0].mxu0 %v2215
        %v2532 = vpop.f32.mrb[0].mxu0
        %v2533 = vadd.f32 0.0, %v2532
        %v2534 = vpop.f32.mrb[0].mxu0
        %2535 = vmatprep.mubr.f32.mxu0 %v2221
        %2536 = vmatmul.mubr.f32.gmra.mrb[0].mxu0 %v2219
        %v2537 = vpop.f32.mrb[0].mxu0
        %v2538 = vadd.f32 0.0, %v2537
        %v2539 = vpop.f32.mrb[0].mxu0
        %2540 = vmatprep.mubr.f32.mxu0 %v2225
        %2541 = vmatmul.mubr.f32.gmra.mrb[0].mxu0 %v2223
        %v2542 = vpop.f32.mrb[0].mxu0
        %v2543 = vadd.f32 0.0, %v2542
        %v2544 = vpop.f32.mrb[0].mxu0
        %2545 = vmatprep.mubr.f32.mxu0 %v2229
        %2546 = vmatmul.mubr.f32.gmra.mrb[0].mxu0 %v2227
        %v2547 = vpop.f32.mrb[0].mxu0
        %v2548 = vadd.f32 0.0, %v2547
        %v2549 = vpop.f32.mrb[0].mxu0
        %2550 = vdwg.mxu0
        %v2551 = vrcp.pop %v2232
        %v2552 = vmul.f32 1.0, %v2551
        %v2553 = vrcp.pop %v2235
        %v2554 = vmul.f32 1.0, %v2553
        %v2555 = vrcp.pop %v2238
        %v2556 = vmul.f32 1.0, %v2555
        %v2557 = vrcp.pop %v2241
        %v2558 = vmul.f32 1.0, %v2557
        %v2559 = vrcp.pop %v2244
        %v2560 = vmul.f32 1.0, %v2559
        %v2561 = vrcp.pop %v2247
        %v2562 = vmul.f32 1.0, %v2561
        %v2563 = vrcp.pop %v2250
        %v2564 = vmul.f32 1.0, %v2563
        %v2565 = vrcp.pop %v2253
        %v2566 = vmul.f32 1.0, %v2565
        %v2567 = vrcp.pop %v2256
        %v2568 = vmul.f32 1.0, %v2567
        %v2569 = vrcp.pop %v2259
        %v2570 = vmul.f32 1.0, %v2569
        %v2571 = vrcp.pop %v2262
        %v2572 = vmul.f32 1.0, %v2571
        %v2573 = vrcp.pop %v2265
        %v2574 = vmul.f32 1.0, %v2573
        %v2575 = vrcp.pop %v2268
        %v2576 = vmul.f32 1.0, %v2575
        %v2577 = vrcp.pop %v2271
        %v2578 = vmul.f32 1.0, %v2577
        %v2579 = vrcp.pop %v2274
        %v2580 = vmul.f32 1.0, %v2579
        %v2581 = vrcp.pop %v2277
        %v2582 = vmul.f32 1.0, %v2581
        %v2583 = vrcp.pop %v2280
        %v2584 = vmul.f32 1.0, %v2583
        %v2585 = vrcp.pop %v2283
        %v2586 = vmul.f32 1.0, %v2585
        %v2587 = vrcp.pop %v2286
        %v2588 = vmul.f32 1.0, %v2587
        %v2589 = vrcp.pop %v2289
        %v2590 = vmul.f32 1.0, %v2589
        %v2591 = vrcp.pop %v2292
        %v2592 = vmul.f32 1.0, %v2591
        %v2593 = vrcp.pop %v2295
        %v2594 = vmul.f32 1.0, %v2593
        %v2595 = vrcp.pop %v2298
        %v2596 = vmul.f32 1.0, %v2595
        %v2597 = vrcp.pop %v2301
        %v2598 = vmul.f32 1.0, %v2597
        %v2599 = vrcp.pop %v2304
        %v2600 = vmul.f32 1.0, %v2599
        %v2601 = vrcp.pop %v2307
        %v2602 = vmul.f32 1.0, %v2601
        %v2603 = vrcp.pop %v2310
        %v2604 = vmul.f32 1.0, %v2603
        %v2605 = vrcp.pop %v2313
        %v2606 = vmul.f32 1.0, %v2605
        %v2607 = vrcp.pop %v2316
        %v2608 = vmul.f32 1.0, %v2607
        %v2609 = vrcp.pop %v2319
        %v2610 = vmul.f32 1.0, %v2609
        %v2611 = vrcp.pop %v2322
        %v2612 = vmul.f32 1.0, %v2611
        %v2613 = vrcp.pop %v2325
        %v2614 = vmul.f32 1.0, %v2613
        %v2615 = vmul.f32 %v2393, %v2552
        %v2616 = vmul.f32 %v2398, %v2554
        %v2617 = vmul.f32 %v2403, %v2556
        %v2618 = vmul.f32 %v2408, %v2558
        %v2619 = vmul.f32 %v2413, %v2560
        %v2620 = vmul.f32 %v2418, %v2562
        %v2621 = vmul.f32 %v2423, %v2564
        %v2622 = vmul.f32 %v2428, %v2566
        %v2623 = vmul.f32 %v2433, %v2568
        %v2624 = vmul.f32 %v2438, %v2570
        %v2625 = vmul.f32 %v2443, %v2572
        %v2626 = vmul.f32 %v2448, %v2574
        %v2627 = vmul.f32 %v2453, %v2576
        %v2628 = vmul.f32 %v2458, %v2578
        %v2629 = vmul.f32 %v2463, %v2580
        %v2630 = vmul.f32 %v2468, %v2582
        %v2631 = vmul.f32 %v2473, %v2584
        %v2632 = vmul.f32 %v2478, %v2586
        %v2633 = vmul.f32 %v2483, %v2588
        %v2634 = vmul.f32 %v2488, %v2590
        %v2635 = vmul.f32 %v2493, %v2592
        %v2636 = vmul.f32 %v2498, %v2594
        %v2637 = vmul.f32 %v2503, %v2596
        %v2638 = vmul.f32 %v2508, %v2598
        %v2639 = vmul.f32 %v2513, %v2600
        %v2640 = vmul.f32 %v2518, %v2602
        %v2641 = vmul.f32 %v2523, %v2604
        %v2642 = vmul.f32 %v2528, %v2606
        %v2643 = vmul.f32 %v2533, %v2608
        %v2644 = vmul.f32 %v2538, %v2610
        %v2645 = vmul.f32 %v2543, %v2612
        %v2646 = vmul.f32 %v2548, %v2614
        %2647 = vxpose.xlu0.b32.start [1/16] %v2615, 128
        %2648 = vxpose.xlu0.b32.cont [2/16] %v2616, 128
        %2649 = vxpose.xlu0.b32.cont [3/16] %v2617, 128
        %2650 = vxpose.xlu0.b32.cont [4/16] %v2618, 128
        %2651 = vxpose.xlu0.b32.cont [5/16] %v2619, 128
        %2652 = vxpose.xlu0.b32.cont [6/16] %v2620, 128
        %2653 = vxpose.xlu0.b32.cont [7/16] %v2621, 128
        %2654 = vxpose.xlu0.b32.cont [8/16] %v2622, 128
        %2655 = vxpose.xlu0.b32.cont [9/16] %v2623, 128
        %2656 = vxpose.xlu0.b32.cont [10/16] %v2624, 128
        %2657 = vxpose.xlu0.b32.cont [11/16] %v2625, 128
        %2658 = vxpose.xlu0.b32.cont [12/16] %v2626, 128
        %2659 = vxpose.xlu0.b32.cont [13/16] %v2627, 128
        %2660 = vxpose.xlu0.b32.cont [14/16] %v2628, 128
        %2661 = vxpose.xlu0.b32.cont [15/16] %v2629, 128
        %2662 = vxpose.xlu0.b32.end [16/16] %v2630, 128
        %v2663 = vpop.trf.xlu0
        %v2664 = vpop.trf.xlu0
        %v2665 = vpop.trf.xlu0
        %v2666 = vpop.trf.xlu0
        %v2667 = vpop.trf.xlu0
        %v2668 = vpop.trf.xlu0
        %v2669 = vpop.trf.xlu0
        %v2670 = vpop.trf.xlu0
        %v2671 = vpop.trf.xlu0
        %v2672 = vpop.trf.xlu0
        %v2673 = vpop.trf.xlu0
        %v2674 = vpop.trf.xlu0
        %v2675 = vpop.trf.xlu0
        %v2676 = vpop.trf.xlu0
        %v2677 = vpop.trf.xlu0
        %v2678 = vpop.trf.xlu0
        %2679 = vxpose.xlu0.b32.start [1/16] %v2631, 128
        %2680 = vxpose.xlu0.b32.cont [2/16] %v2632, 128
        %2681 = vxpose.xlu0.b32.cont [3/16] %v2633, 128
        %2682 = vxpose.xlu0.b32.cont [4/16] %v2634, 128
        %2683 = vxpose.xlu0.b32.cont [5/16] %v2635, 128
        %2684 = vxpose.xlu0.b32.cont [6/16] %v2636, 128
        %2685 = vxpose.xlu0.b32.cont [7/16] %v2637, 128
        %2686 = vxpose.xlu0.b32.cont [8/16] %v2638, 128
        %2687 = vxpose.xlu0.b32.cont [9/16] %v2639, 128
        %2688 = vxpose.xlu0.b32.cont [10/16] %v2640, 128
        %2689 = vxpose.xlu0.b32.cont [11/16] %v2641, 128
        %2690 = vxpose.xlu0.b32.cont [12/16] %v2642, 128
        %2691 = vxpose.xlu0.b32.cont [13/16] %v2643, 128
        %2692 = vxpose.xlu0.b32.cont [14/16] %v2644, 128
        %2693 = vxpose.xlu0.b32.cont [15/16] %v2645, 128
        %2694 = vxpose.xlu0.b32.end [16/16] %v2646, 128
        %v2695 = vpop.trf.xlu0
        %v2696 = vpop.trf.xlu0
        %v2697 = vpop.trf.xlu0
        %v2698 = vpop.trf.xlu0
        %v2699 = vpop.trf.xlu0
        %v2700 = vpop.trf.xlu0
        %v2701 = vpop.trf.xlu0
        %v2702 = vpop.trf.xlu0
        %v2703 = vpop.trf.xlu0
        %v2704 = vpop.trf.xlu0
        %v2705 = vpop.trf.xlu0
        %v2706 = vpop.trf.xlu0
        %v2707 = vpop.trf.xlu0
        %v2708 = vpop.trf.xlu0
        %v2709 = vpop.trf.xlu0
        %v2710 = vpop.trf.xlu0
        %v2713 = vrot.slane %v2663, 4
        %v2714 = vrot.slane %v2695, 4
        %vm2717 = vcmask 1043456
        %v2718 = vsel %vm2717, %v1477, %v2713
        %v2719 = vsel %vm2717, %v1509, %v2714
        %2720 = vst [vmem:[%s136] sm:$0xff] %v2718
        %2721 = vst [vmem:[%s136 + $0x8] sm:$0xff] %v2719
        %s2722 = sand.u32 %s71, 1
        %s2723 = scalar_lea.sflag [#allocation3], %s2722
        %s2724 = sand.u32 %s71, 1
        %s2725 = smul.addr %s2724, 16
        %s2726 = scalar_lea.vmem [#allocation2], %s2725
        // Predicated region
        $region29: #{tpu_custom_call.1} parent=27 // pred_check
          %p2727 = pneg %p81
        $region30: #{tpu_custom_call.1} parent=27 // pred_check_branch
          %2729 = sbr.rel (%p2727) target = $region32
        $region31: #{tpu_custom_call.1} parent=27 // pred_region
          %s2731 = ssub.s32 256, 256
          %2732 = vsyncadd %s2723, %s2731
          %s2733 = smul.addr %s16, 2
          %s2734 = smul.addr %s2733, 128
          %s2735 = scalar_lea.hbm %s2, %s2734
          %s2737 = sshll.u32 %s2726, 4
          %s2738 = int_to_ptr.vmem [resolvable:$true] %s2737
          %2740 = dma.vmem_to_hbm [thread:$0]  %s2738, 256, %s2735, %s2723
        $region32: #{tpu_custom_call.1} parent=27 // pred_fallthru
          _
      $region28: #{tpu_custom_call.1} parent=5 // pred_fallthru
        _
      %p2741 = scmp.le.s32.totalorder 2, %s11
      // Predicated region
      $region33: #{tpu_custom_call.1} parent=5 // pred_check
        %p2742 = pneg %p2741
      $region34: #{tpu_custom_call.1} parent=5 // pred_check_branch
        %2744 = sbr.rel (%p2742) target = $region36
      $region35: #{tpu_custom_call.1} parent=5 // pred_region
        %s2745 = ssub.s32 %s11, 2
        // Predicated region
        $region37: #{tpu_custom_call.1} parent=35 // pred_check
          %p2746 = pneg %p87
        $region38: #{tpu_custom_call.1} parent=35 // pred_check_branch
          %2748 = sbr.rel (%p2746) target = $region40
        $region39: #{tpu_custom_call.1} parent=35 // pred_region
          %s2749 = sand.u32 %s72, 1
          %s2750 = scalar_lea.sflag [#allocation3], %s2749
          %s2751 = sand.u32 %s72, 1
          %s2752 = smul.addr %s2751, 16
          %s2753 = scalar_lea.vmem [#allocation2], %s2752
          %2754 = dma.done %s2750, 256
        $region40: #{tpu_custom_call.1} parent=35 // pred_fallthru
          _
      $region36: #{tpu_custom_call.1} parent=5 // pred_fallthru
        _
    $region6: #{tpu_custom_call.1} parent=1 // loop_footer
      %s15 = sadd.s32 1, %s11
    $region7: #{tpu_custom_call.1} parent=1 // loop_footer_branch
      %10 = sbr.rel target = $region3
    $region8: #{tpu_custom_call.1} parent=1 // loop_exit
      _
    %2755 = vsyncpa [#allocation3], 1
    %s2756 = scalar_lea.sflag [#allocation3], 1
    %2757 = vsyncpa %s2756, 1

</llo_original>
